<compile_context>
chip_gen: v7x
topology: tpu7x:2x2x1
jax: 0.10.0
libtpu: 0.0.40
codegen_flags: <defaults>
</compile_context>

<pallas_src>
import functools

import jax
import jax.numpy as jnp
import numpy as np
from jax import lax
from jax.experimental import pallas as pl
from jax.experimental.pallas import tpu as pltpu


# ----------------------------------------------------------------------------
# Fused kernel
# ----------------------------------------------------------------------------
def fused_encoder_kernel(x_ref, w9t_ref, b9_ref, kbig_ref, ones_bd_ref,
                         triu_bd_ref, wo_ref, w1_ref, b1_ref, w2_ref, vec_ref,
                         out_ref, *, nhead):
    f32, bf16 = jnp.float32, jnp.bfloat16
    L, E = x_ref.shape
    HL = nhead * L

    def dotb(a, b, nt=False):
        # bf16 operands, f32 accumulation.  nt=True contracts the LAST axis of both
        # operands (A @ B.T without a transpose).
        dims = (((1,), (1,)) if nt else ((1,), (0,)), ((), ()))
        return lax.dot_general(a.astype(bf16), b.astype(bf16), dims,
                               preferred_element_type=f32)

    def dotf(a, b):
        # f32 matmul -- used only for the precision-sensitive consistent_feature.
        return lax.dot_general(a, b, (((1,), (0,)), ((), ())),
                               preferred_element_type=f32)

    def layer_norm(t, g, b):
        mu = jnp.mean(t, axis=-1, keepdims=True)
        var = jnp.mean((t - mu) ** 2, axis=-1, keepdims=True)
        return (t - mu) * lax.rsqrt(var + 1e-5) * g + b

    ones_bd = ones_bd_ref[...]                        # (HL, HL) bf16, block-diag ones

    def softmax_blocked(s):
        # Independent softmax over each L-wide head block of s (L, H*L).  Subtracting
        # the row-global max is exact (softmax is shift-invariant per block); per-block
        # sums come from one MXU pass against the block-diagonal ones matrix.
        m = jnp.max(s, axis=-1, keepdims=True)
        e = jnp.exp(s - m)
        denom = dotb(e, ones_bd)                      # block sums broadcast per block
        return e * pl.reciprocal(denom, approx=True)

    x = x_ref[...]                                    # (L, E) f32
    x16 = x.astype(bf16)

    # Fused 9-way input projection (bf16 MXU, f32 accumulation).  Columns pre-ordered
    # by the wrapper as [q*0.1*scaling | q_left | q_right | q_loc*scaling |
    # k | k_left | k_right | k_loc | v] with the query scalings folded into W / b.
    proj = dotb(x16, w9t_ref[...]) + b9_ref[...]      # (L, 9E) f32

    q_cat = proj[:, :4 * E]                           # (L, 4E)  lane-dense
    k_cat = proj[:, 4 * E:8 * E]                      # (L, 4E)
    v = proj[:, 8 * E:]                               # (L, E)

    # All four per-head score matrices from ONE lane-dense MXU pass: stack k_cat over
    # (type, head) rows and mask it so that
    #   scores4[l, t*HL + h*L + j] = <q_type_t_head_h[l, :], k_type_t_head_h[j, :]>.
    k_big = jnp.tile(k_cat.astype(bf16), (4 * nhead, 1)) * kbig_ref[...]
    scores4 = dotb(q_cat, k_big, nt=True)             # (L, 4*H*L) f32

    s_glob = scores4[:, :HL]                          # already scaled by 0.1*scaling
    s_left = scores4[:, HL:2 * HL]
    s_right = scores4[:, 2 * HL:3 * HL]
    s_loc = scores4[:, 3 * HL:]                       # already scaled by scaling

    # Local mask (per head, block-diagonal column layout).  triu_bd is 0/1 -> exact in
    # bf16; "@ triu.T" is the nt=True contraction (no transpose, no triu_t input).
    lm = softmax_blocked(s_left)
    rm = softmax_blocked(s_right)
    lm16 = lm.astype(bf16)
    rm16 = rm.astype(bf16)
    triu_bd = triu_bd_ref[...]
    local_mask = (dotb(lm16, triu_bd) * dotb(rm16, triu_bd, nt=True)
                  + dotb(lm16, triu_bd, nt=True) * dotb(rm16, triu_bd))   # (L, HL) f32

    # consistent_feature = (sum_h local_mask_h) @ x  ==  local_mask_all @ tile(x, H).
    # Kept f32: precision-sensitive output, negligible MXU cost at any size.
    cf = dotf(local_mask, jnp.tile(x, (nhead, 1)))    # (L, E) f32

    # Attention: per-head softmax of (0.1*global + local*mask); attn @ head-masked
    # stacked V emits the heads already concatenated into (L, E) -- no per-head slices,
    # no concat.
    attn_w = softmax_blocked(s_glob + s_loc * local_mask)
    head_mask = kbig_ref[:HL, :E]                     # type-0 block == per-head mask
    v_stk = jnp.tile(v.astype(bf16), (nhead, 1)) * head_mask
    attn_concat = dotb(attn_w, v_stk)                 # (L, E) f32

    # Out-proj + residual + LN1 + FFN(relu) + residual + LN2 (dropouts identity).
    vec = vec_ref[...]                                # (8, E): bo,g1,be1,b2,g2,be2,0,0
    s = x + dotb(attn_concat, wo_ref[...]) + vec[0:1, :]
    s = layer_norm(s, vec[1:2, :], vec[2:3, :])
    hidden = jnp.maximum(dotb(s, w1_ref[...]) + b1_ref[...], 0.0)
    ffn = dotb(hidden, w2_ref[...]) + vec[3:4, :]
    s = layer_norm(s + ffn, vec[4:5, :], vec[5:6, :])

    # Single (L, 2E) output slab (denser store, one output DMA); wrapper splits it.
    out_ref[...] = jnp.concatenate([s, cf], axis=1)


# ----------------------------------------------------------------------------
# Builder: one-time numpy prep (out of the hot path) + jitted runner
# ----------------------------------------------------------------------------
def build_encoder(params, shape, seq_len, batch, d_model):
    L, B, E = seq_len, batch, d_model
    assert B == 1, "consistent_feature path (torch.squeeze(dim=1)) requires B == 1"
    H = params["nhead"]
    hd = E // H
    FF = int(params["w1"].shape[0])
    HL = H * L
    scaling = float(hd) ** -0.5
    s0, s1 = shape
    assert s0 * s1 == L

    # ---- reorder / scale / transpose the 9-way projection (compile-time) ----
    W = np.asarray(params["in_proj_w"], np.float32)        # (9E, E)
    bvec = np.asarray(params["in_proj_b"], np.float32)     # (9E,)
    # new order: q, q_left, q_right, q_loc | k, k_left, k_right, k_loc, v
    order = (0, 3, 5, 7, 1, 4, 6, 8, 2)
    fold = {0: 0.1 * scaling, 7: scaling}                  # query scalings folded in
    w_cols, b_cols = [], []
    for idx in order:
        sc = fold.get(idx, 1.0)
        w_cols.append(W[idx * E:(idx + 1) * E].T * sc)     # (E, E): x @ chunk.T
        b_cols.append(bvec[idx * E:(idx + 1) * E] * sc)
    w9t = np.concatenate(w_cols, axis=1)                   # (E, 9E)
    b9 = np.concatenate(b_cols)[None, :]                   # (1, 9E)

    # ---- 0/1 structural constants (exact in bf16) ----
    triu = np.triu(np.ones((L, L), np.float32))
    triu *= np.tile(np.triu(np.ones((s1, s1), np.float32)), (s0, s0))

    kbig_mask = np.zeros((4 * HL, 4 * E), np.float32)      # (type, head) row masking
    ones_bd = np.zeros((HL, HL), np.float32)               # block-diag ones
    triu_bd = np.zeros((HL, HL), np.float32)               # block-diag local triu
    for h in range(H):
        ones_bd[h * L:(h + 1) * L, h * L:(h + 1) * L] = 1.0
        triu_bd[h * L:(h + 1) * L, h * L:(h + 1) * L] = triu
        for t in range(4):
            kbig_mask[t * HL + h * L: t * HL + (h + 1) * L,
                      t * E + h * hd: t * E + (h + 1) * hd] = 1.0

    # ---- pack the six (E,) vectors into one slab ----
    vec = np.zeros((8, E), np.float32)
    vec[0] = np.asarray(params["bo"], np.float32)
    vec[1] = np.asarray(params["g1"], np.float32)
    vec[2] = np.asarray(params["be1"], np.float32)
    vec[3] = np.asarray(params["b2"], np.float32)
    vec[4] = np.asarray(params["g2"], np.float32)
    vec[5] = np.asarray(params["be2"], np.float32)

    bf = lambda a: jnp.asarray(a, jnp.bfloat16)
    f32 = lambda a: jnp.asarray(a, jnp.float32)

    consts = (
        bf(w9t), f32(b9), bf(kbig_mask), bf(ones_bd), bf(triu_bd),
        bf(np.asarray(params["wo"], np.float32).T),
        bf(np.asarray(params["w1"], np.float32).T),
        f32(np.asarray(params["b1"], np.float32)[None, :]),
        bf(np.asarray(params["w2"], np.float32).T),
        f32(vec),
    )

    vmem = pl.BlockSpec(memory_space=pltpu.MemorySpace.VMEM)
    call = pl.pallas_call(
        functools.partial(fused_encoder_kernel, nhead=H),
        in_specs=[vmem] * (1 + len(consts)),
        out_specs=vmem,
        out_shape=jax.ShapeDtypeStruct((L, 2 * E), jnp.float32),
    )

    @jax.jit
    def run(src):
        x = src.reshape(L, E)
        packed = call(x, *consts)
        return packed[:, :E].reshape(L, B, E), packed[:, E:]

    return run


# ----------------------------------------------------------------------------
# Pure-JAX reference (mirrors the PyTorch forward_post, eval mode, f32)
# ----------------------------------------------------------------------------
def reference_forward(src, shape, p):
    L, B, E = src.shape
    H = p["nhead"]
    hd = E // H
    scaling = float(hd) ** -0.5

    W, bvec = p["in_proj_w"], p["in_proj_b"]

    def lin(x, i):
        w = W[i * E:(i + 1) * E]
        b = bvec[i * E:(i + 1) * E]
        return jnp.einsum("lbe,oe->lbo", x, w) + b

    q, k, v = lin(src, 0), lin(src, 1), lin(src, 2)
    q_left, k_left = lin(src, 3), lin(src, 4)
    q_right, k_right = lin(src, 5), lin(src, 6)
    q_loc, k_loc = lin(src, 7), lin(src, 8)
    q = q * scaling
    q_loc = q_loc * scaling

    def heads(t):
        return t.reshape(L, B * H, hd).transpose(1, 0, 2)

    q, k, v = heads(q), heads(k), heads(v)
    q_left, k_left = heads(q_left), heads(k_left)
    q_right, k_right = heads(q_right), heads(k_right)
    q_loc, k_loc = heads(q_loc), heads(k_loc)

    gw = jnp.einsum("hld,hmd->hlm", q, k)
    lw = jnp.einsum("hld,hmd->hlm", q_loc, k_loc)
    la = jax.nn.softmax(jnp.einsum("hld,hmd->hlm", q_left, k_left), axis=-1)
    ra = jax.nn.softmax(jnp.einsum("hld,hmd->hlm", q_right, k_right), axis=-1)

    s0, s1 = shape
    triu = jnp.triu(jnp.ones((L, L), jnp.float32))
    triu = triu * jnp.tile(jnp.triu(jnp.ones((s1, s1), jnp.float32)), (s0, s0))
    triu_t = triu.T

    fw = (la @ triu) * (ra @ triu_t)
    bw = (la @ triu_t) * (ra @ triu)
    local_mask = fw + bw

    aw = jax.nn.softmax(0.1 * gw + lw * local_mask, axis=-1)
    attn = jnp.einsum("hlm,hmd->hld", aw, v)
    attn = attn.transpose(1, 0, 2).reshape(L, B, E)
    attn = jnp.einsum("lbe,oe->lbo", attn, p["wo"]) + p["bo"]

    consistent_mask = jnp.sum(local_mask, axis=0)
    consistent_feature = consistent_mask @ src.reshape(L, E)

    def ln(x, g, b):
        mu = x.mean(-1, keepdims=True)
        var = ((x - mu) ** 2).mean(-1, keepdims=True)
        return (x - mu) / jnp.sqrt(var + 1e-5) * g + b

    s = src + attn
    s = ln(s, p["g1"], p["be1"])
    f = jnp.maximum(jnp.einsum("lbe,fe->lbf", s, p["w1"]) + p["b1"], 0.0)
    f = jnp.einsum("lbf,ef->lbe", f, p["w2"]) + p["b2"]
    s = s + f
    s = ln(s, p["g2"], p["be2"])
    return s, consistent_feature


# ----------------------------------------------------------------------------
if __name__ == "__main__":
    # small config: d_model=32, nhead=4, dim_feedforward=64, seq=16 (shape=(4,4)), batch=1
    L, B, E, H, FF = 16, 1, 32, 4, 64
    shape = (4, 4)

    key = jax.random.PRNGKey(0)
    ks = jax.random.split(key, 8)

    def xavier(k, shp):
        fan_out, fan_in = shp
        bound = (6.0 / (fan_in + fan_out)) ** 0.5
        return jax.random.uniform(k, shp, jnp.float32, -bound, bound)

    params = dict(
        nhead=H,
        in_proj_w=xavier(ks[0], (9 * E, E)),
        in_proj_b=jnp.zeros((9 * E,), jnp.float32),
        wo=xavier(ks[1], (E, E)),
        bo=jnp.zeros((E,), jnp.float32),
        w1=xavier(ks[2], (FF, E)),
        b1=0.01 * jax.random.normal(ks[3], (FF,), jnp.float32),
        w2=xavier(ks[4], (E, FF)),
        b2=0.01 * jax.random.normal(ks[5], (E,), jnp.float32),
        g1=jnp.ones((E,), jnp.float32),
        be1=jnp.zeros((E,), jnp.float32),
        g2=jnp.ones((E,), jnp.float32),
        be2=jnp.zeros((E,), jnp.float32),
    )

    src = jax.random.normal(ks[6], (L, B, E), jnp.float32)

    encoder = build_encoder(params, shape, L, B, E)
    out, consistent_feature = encoder(src)
    out = jax.block_until_ready(out)
    consistent_feature = jax.block_until_ready(consistent_feature)

    ref_out, ref_cf = reference_forward(src, shape, params)
    np.testing.assert_allclose(np.asarray(out), np.asarray(ref_out),
                               rtol=2e-2, atol=2e-2)
    np.testing.assert_allclose(np.asarray(consistent_feature), np.asarray(ref_cf),
                               rtol=2e-2, atol=2e-2)

    print("KERNEL_OK")
</pallas_src>

<mosaic_0001>
module attributes {stable_mosaic.version = 11 : i64} {
  func.func @fused_encoder_kernel(%arg0: memref<16x32xf32, #tpu.memory_space<vmem>>, %arg1: memref<32x288xbf16, #tpu.memory_space<vmem>>, %arg2: memref<1x288xf32, #tpu.memory_space<vmem>>, %arg3: memref<256x128xbf16, #tpu.memory_space<vmem>>, %arg4: memref<64x64xbf16, #tpu.memory_space<vmem>>, %arg5: memref<64x64xbf16, #tpu.memory_space<vmem>>, %arg6: memref<32x32xbf16, #tpu.memory_space<vmem>>, %arg7: memref<32x64xbf16, #tpu.memory_space<vmem>>, %arg8: memref<1x64xf32, #tpu.memory_space<vmem>>, %arg9: memref<64x32xbf16, #tpu.memory_space<vmem>>, %arg10: memref<8x32xf32, #tpu.memory_space<vmem>>, %arg11: memref<16x64xf32, #tpu.memory_space<vmem>>) attributes {dimension_semantics = [], scalar_prefetch = 0 : i64, scratch_operands = 0 : i64, tpu.core_type = #tpu.core_type<tc>} {
    %c0 = arith.constant 0 : index
    %c0_0 = arith.constant 0 : index
    %0 = vector.load %arg4[%c0, %c0_0] : memref<64x64xbf16, #tpu.memory_space<vmem>>, vector<64x64xbf16>
    %c0_1 = arith.constant 0 : index
    %c0_2 = arith.constant 0 : index
    %1 = vector.load %arg0[%c0_1, %c0_2] : memref<16x32xf32, #tpu.memory_space<vmem>>, vector<16x32xf32>
    %2 = arith.truncf %1 : vector<16x32xf32> to vector<16x32xbf16>
    %c0_3 = arith.constant 0 : index
    %c0_4 = arith.constant 0 : index
    %3 = vector.load %arg1[%c0_3, %c0_4] : memref<32x288xbf16, #tpu.memory_space<vmem>>, vector<32x288xbf16>
    %cst = arith.constant dense<0.000000e+00> : vector<16x288xf32>
    %4 = tpu.matmul %2, %3, %cst {dimension_numbers = #tpu.dot_dimension_numbers<[1], [0], [0], [1], [0, 0, 1, 1], [], []>} : vector<16x32xbf16>, vector<32x288xbf16>, vector<16x288xf32> -> vector<16x288xf32>
    %c0_5 = arith.constant 0 : index
    %c0_6 = arith.constant 0 : index
    %5 = vector.load %arg2[%c0_5, %c0_6] : memref<1x288xf32, #tpu.memory_space<vmem>>, vector<1x288xf32>
    %6 = vector.broadcast %5 : vector<1x288xf32> to vector<16x288xf32>
    %7 = arith.addf %4, %6 : vector<16x288xf32>
    %8 = vector.extract_strided_slice %7 {offsets = [0, 0], sizes = [16, 128], strides = [1, 1]} : vector<16x288xf32> to vector<16x128xf32>
    %9 = vector.extract_strided_slice %7 {offsets = [0, 128], sizes = [16, 128], strides = [1, 1]} : vector<16x288xf32> to vector<16x128xf32>
    %10 = vector.extract_strided_slice %7 {offsets = [0, 256], sizes = [16, 32], strides = [1, 1]} : vector<16x288xf32> to vector<16x32xf32>
    %11 = arith.truncf %9 : vector<16x128xf32> to vector<16x128xbf16>
    %12 = tpu.concatenate %11, %11, %11, %11, %11, %11, %11, %11, %11, %11, %11, %11, %11, %11, %11, %11 in 0 : vector<16x128xbf16>, vector<16x128xbf16>, vector<16x128xbf16>, vector<16x128xbf16>, vector<16x128xbf16>, vector<16x128xbf16>, vector<16x128xbf16>, vector<16x128xbf16>, vector<16x128xbf16>, vector<16x128xbf16>, vector<16x128xbf16>, vector<16x128xbf16>, vector<16x128xbf16>, vector<16x128xbf16>, vector<16x128xbf16>, vector<16x128xbf16> -> vector<256x128xbf16>
    %c0_7 = arith.constant 0 : index
    %c0_8 = arith.constant 0 : index
    %13 = vector.load %arg3[%c0_7, %c0_8] : memref<256x128xbf16, #tpu.memory_space<vmem>>, vector<256x128xbf16>
    %14 = arith.mulf %12, %13 : vector<256x128xbf16>
    %15 = arith.truncf %8 : vector<16x128xf32> to vector<16x128xbf16>
    %cst_9 = arith.constant dense<0.000000e+00> : vector<16x256xf32>
    %16 = tpu.matmul %15, %14, %cst_9 {dimension_numbers = #tpu.dot_dimension_numbers<[1], [1], [0], [0], [0, 0, 1, 0], [], []>} : vector<16x128xbf16>, vector<256x128xbf16>, vector<16x256xf32> -> vector<16x256xf32>
    %17 = vector.extract_strided_slice %16 {offsets = [0, 0], sizes = [16, 64], strides = [1, 1]} : vector<16x256xf32> to vector<16x64xf32>
    %18 = vector.extract_strided_slice %16 {offsets = [0, 64], sizes = [16, 64], strides = [1, 1]} : vector<16x256xf32> to vector<16x64xf32>
    %19 = vector.extract_strided_slice %16 {offsets = [0, 128], sizes = [16, 64], strides = [1, 1]} : vector<16x256xf32> to vector<16x64xf32>
    %20 = vector.extract_strided_slice %16 {offsets = [0, 192], sizes = [16, 64], strides = [1, 1]} : vector<16x256xf32> to vector<16x64xf32>
    %cst_10 = arith.constant dense<0xFF800000> : vector<16xf32>
    %21 = vector.multi_reduction <maximumf>, %18, %cst_10 [1] : vector<16x64xf32> to vector<16xf32>
    %22 = vector.shape_cast %21 : vector<16xf32> to vector<16x1xf32>
    %23 = vector.broadcast %22 : vector<16x1xf32> to vector<16x64xf32>
    %24 = arith.subf %18, %23 : vector<16x64xf32>
    %25 = math.exp %24 : vector<16x64xf32>
    %26 = arith.truncf %25 : vector<16x64xf32> to vector<16x64xbf16>
    %cst_11 = arith.constant dense<0.000000e+00> : vector<16x64xf32>
    %27 = tpu.matmul %26, %0, %cst_11 {dimension_numbers = #tpu.dot_dimension_numbers<[1], [0], [0], [1], [0, 0, 1, 1], [], []>} : vector<16x64xbf16>, vector<64x64xbf16>, vector<16x64xf32> -> vector<16x64xf32>
    %28 = tpu.reciprocal %27 {approx = true} : vector<16x64xf32> -> vector<16x64xf32>
    %29 = arith.mulf %25, %28 : vector<16x64xf32>
    %cst_12 = arith.constant dense<0xFF800000> : vector<16xf32>
    %30 = vector.multi_reduction <maximumf>, %19, %cst_12 [1] : vector<16x64xf32> to vector<16xf32>
    %31 = vector.shape_cast %30 : vector<16xf32> to vector<16x1xf32>
    %32 = vector.broadcast %31 : vector<16x1xf32> to vector<16x64xf32>
    %33 = arith.subf %19, %32 : vector<16x64xf32>
    %34 = math.exp %33 : vector<16x64xf32>
    %35 = arith.truncf %34 : vector<16x64xf32> to vector<16x64xbf16>
    %cst_13 = arith.constant dense<0.000000e+00> : vector<16x64xf32>
    %36 = tpu.matmul %35, %0, %cst_13 {dimension_numbers = #tpu.dot_dimension_numbers<[1], [0], [0], [1], [0, 0, 1, 1], [], []>} : vector<16x64xbf16>, vector<64x64xbf16>, vector<16x64xf32> -> vector<16x64xf32>
    %37 = tpu.reciprocal %36 {approx = true} : vector<16x64xf32> -> vector<16x64xf32>
    %38 = arith.mulf %34, %37 : vector<16x64xf32>
    %39 = arith.truncf %29 : vector<16x64xf32> to vector<16x64xbf16>
    %40 = arith.truncf %38 : vector<16x64xf32> to vector<16x64xbf16>
    %c0_14 = arith.constant 0 : index
    %c0_15 = arith.constant 0 : index
    %41 = vector.load %arg5[%c0_14, %c0_15] : memref<64x64xbf16, #tpu.memory_space<vmem>>, vector<64x64xbf16>
    %cst_16 = arith.constant dense<0.000000e+00> : vector<16x64xf32>
    %42 = tpu.matmul %39, %41, %cst_16 {dimension_numbers = #tpu.dot_dimension_numbers<[1], [0], [0], [1], [0, 0, 1, 1], [], []>} : vector<16x64xbf16>, vector<64x64xbf16>, vector<16x64xf32> -> vector<16x64xf32>
    %cst_17 = arith.constant dense<0.000000e+00> : vector<16x64xf32>
    %43 = tpu.matmul %40, %41, %cst_17 {dimension_numbers = #tpu.dot_dimension_numbers<[1], [1], [0], [0], [0, 0, 1, 0], [], []>} : vector<16x64xbf16>, vector<64x64xbf16>, vector<16x64xf32> -> vector<16x64xf32>
    %44 = arith.mulf %42, %43 : vector<16x64xf32>
    %cst_18 = arith.constant dense<0.000000e+00> : vector<16x64xf32>
    %45 = tpu.matmul %39, %41, %cst_18 {dimension_numbers = #tpu.dot_dimension_numbers<[1], [1], [0], [0], [0, 0, 1, 0], [], []>} : vector<16x64xbf16>, vector<64x64xbf16>, vector<16x64xf32> -> vector<16x64xf32>
    %cst_19 = arith.constant dense<0.000000e+00> : vector<16x64xf32>
    %46 = tpu.matmul %40, %41, %cst_19 {dimension_numbers = #tpu.dot_dimension_numbers<[1], [0], [0], [1], [0, 0, 1, 1], [], []>} : vector<16x64xbf16>, vector<64x64xbf16>, vector<16x64xf32> -> vector<16x64xf32>
    %47 = arith.mulf %45, %46 : vector<16x64xf32>
    %48 = arith.addf %44, %47 : vector<16x64xf32>
    %49 = tpu.concatenate %1, %1, %1, %1 in 0 : vector<16x32xf32>, vector<16x32xf32>, vector<16x32xf32>, vector<16x32xf32> -> vector<64x32xf32>
    %cst_20 = arith.constant dense<0.000000e+00> : vector<16x32xf32>
    %50 = tpu.matmul %48, %49, %cst_20 {dimension_numbers = #tpu.dot_dimension_numbers<[1], [0], [0], [1], [0, 0, 1, 1], [], []>} : vector<16x64xf32>, vector<64x32xf32>, vector<16x32xf32> -> vector<16x32xf32>
    %51 = arith.mulf %20, %48 : vector<16x64xf32>
    %52 = arith.addf %17, %51 : vector<16x64xf32>
    %cst_21 = arith.constant dense<0xFF800000> : vector<16xf32>
    %53 = vector.multi_reduction <maximumf>, %52, %cst_21 [1] : vector<16x64xf32> to vector<16xf32>
    %54 = vector.shape_cast %53 : vector<16xf32> to vector<16x1xf32>
    %55 = vector.broadcast %54 : vector<16x1xf32> to vector<16x64xf32>
    %56 = arith.subf %52, %55 : vector<16x64xf32>
    %57 = math.exp %56 : vector<16x64xf32>
    %58 = arith.truncf %57 : vector<16x64xf32> to vector<16x64xbf16>
    %cst_22 = arith.constant dense<0.000000e+00> : vector<16x64xf32>
    %59 = tpu.matmul %58, %0, %cst_22 {dimension_numbers = #tpu.dot_dimension_numbers<[1], [0], [0], [1], [0, 0, 1, 1], [], []>} : vector<16x64xbf16>, vector<64x64xbf16>, vector<16x64xf32> -> vector<16x64xf32>
    %60 = tpu.reciprocal %59 {approx = true} : vector<16x64xf32> -> vector<16x64xf32>
    %61 = arith.mulf %57, %60 : vector<16x64xf32>
    %c0_23 = arith.constant 0 : index
    %c0_24 = arith.constant 0 : index
    %62 = vector.load %arg3[%c0_23, %c0_24] : memref<256x128xbf16, #tpu.memory_space<vmem>>, vector<64x32xbf16>
    %63 = arith.truncf %10 : vector<16x32xf32> to vector<16x32xbf16>
    %64 = tpu.concatenate %63, %63, %63, %63 in 0 : vector<16x32xbf16>, vector<16x32xbf16>, vector<16x32xbf16>, vector<16x32xbf16> -> vector<64x32xbf16>
    %65 = arith.mulf %64, %62 : vector<64x32xbf16>
    %66 = arith.truncf %61 : vector<16x64xf32> to vector<16x64xbf16>
    %cst_25 = arith.constant dense<0.000000e+00> : vector<16x32xf32>
    %67 = tpu.matmul %66, %65, %cst_25 {dimension_numbers = #tpu.dot_dimension_numbers<[1], [0], [0], [1], [0, 0, 1, 1], [], []>} : vector<16x64xbf16>, vector<64x32xbf16>, vector<16x32xf32> -> vector<16x32xf32>
    %c0_26 = arith.constant 0 : index
    %c0_27 = arith.constant 0 : index
    %68 = vector.load %arg10[%c0_26, %c0_27] : memref<8x32xf32, #tpu.memory_space<vmem>>, vector<8x32xf32>
    %c0_28 = arith.constant 0 : index
    %c0_29 = arith.constant 0 : index
    %69 = vector.load %arg6[%c0_28, %c0_29] : memref<32x32xbf16, #tpu.memory_space<vmem>>, vector<32x32xbf16>
    %70 = arith.truncf %67 : vector<16x32xf32> to vector<16x32xbf16>
    %cst_30 = arith.constant dense<0.000000e+00> : vector<16x32xf32>
    %71 = tpu.matmul %70, %69, %cst_30 {dimension_numbers = #tpu.dot_dimension_numbers<[1], [0], [0], [1], [0, 0, 1, 1], [], []>} : vector<16x32xbf16>, vector<32x32xbf16>, vector<16x32xf32> -> vector<16x32xf32>
    %72 = arith.addf %1, %71 : vector<16x32xf32>
    %73 = vector.extract_strided_slice %68 {offsets = [0, 0], sizes = [1, 32], strides = [1, 1]} : vector<8x32xf32> to vector<1x32xf32>
    %74 = vector.broadcast %73 : vector<1x32xf32> to vector<16x32xf32>
    %75 = arith.addf %72, %74 : vector<16x32xf32>
    %76 = vector.extract_strided_slice %68 {offsets = [1, 0], sizes = [1, 32], strides = [1, 1]} : vector<8x32xf32> to vector<1x32xf32>
    %77 = vector.extract_strided_slice %68 {offsets = [2, 0], sizes = [1, 32], strides = [1, 1]} : vector<8x32xf32> to vector<1x32xf32>
    %cst_31 = arith.constant dense<0.000000e+00> : vector<16xf32>
    %78 = vector.multi_reduction <add>, %75, %cst_31 [1] : vector<16x32xf32> to vector<16xf32>
    %79 = vector.shape_cast %78 : vector<16xf32> to vector<16x1xf32>
    %cst_32 = arith.constant 3.200000e+01 : f32
    %80 = vector.broadcast %cst_32 : f32 to vector<16x1xf32>
    %81 = arith.divf %79, %80 : vector<16x1xf32>
    %82 = vector.broadcast %81 : vector<16x1xf32> to vector<16x32xf32>
    %83 = arith.subf %75, %82 : vector<16x32xf32>
    %84 = arith.mulf %83, %83 : vector<16x32xf32>
    %cst_33 = arith.constant dense<0.000000e+00> : vector<16xf32>
    %85 = vector.multi_reduction <add>, %84, %cst_33 [1] : vector<16x32xf32> to vector<16xf32>
    %86 = vector.shape_cast %85 : vector<16xf32> to vector<16x1xf32>
    %cst_34 = arith.constant 3.200000e+01 : f32
    %87 = vector.broadcast %cst_34 : f32 to vector<16x1xf32>
    %88 = arith.divf %86, %87 : vector<16x1xf32>
    %89 = vector.broadcast %81 : vector<16x1xf32> to vector<16x32xf32>
    %90 = arith.subf %75, %89 : vector<16x32xf32>
    %cst_35 = arith.constant 9.99999974E-6 : f32
    %91 = vector.broadcast %cst_35 : f32 to vector<16x1xf32>
    %92 = arith.addf %88, %91 : vector<16x1xf32>
    %93 = math.rsqrt %92 : vector<16x1xf32>
    %94 = vector.broadcast %93 : vector<16x1xf32> to vector<16x32xf32>
    %95 = arith.mulf %90, %94 : vector<16x32xf32>
    %96 = vector.broadcast %76 : vector<1x32xf32> to vector<16x32xf32>
    %97 = arith.mulf %95, %96 : vector<16x32xf32>
    %98 = vector.broadcast %77 : vector<1x32xf32> to vector<16x32xf32>
    %99 = arith.addf %97, %98 : vector<16x32xf32>
    %c0_36 = arith.constant 0 : index
    %c0_37 = arith.constant 0 : index
    %100 = vector.load %arg7[%c0_36, %c0_37] : memref<32x64xbf16, #tpu.memory_space<vmem>>, vector<32x64xbf16>
    %101 = arith.truncf %99 : vector<16x32xf32> to vector<16x32xbf16>
    %cst_38 = arith.constant dense<0.000000e+00> : vector<16x64xf32>
    %102 = tpu.matmul %101, %100, %cst_38 {dimension_numbers = #tpu.dot_dimension_numbers<[1], [0], [0], [1], [0, 0, 1, 1], [], []>} : vector<16x32xbf16>, vector<32x64xbf16>, vector<16x64xf32> -> vector<16x64xf32>
    %c0_39 = arith.constant 0 : index
    %c0_40 = arith.constant 0 : index
    %103 = vector.load %arg8[%c0_39, %c0_40] : memref<1x64xf32, #tpu.memory_space<vmem>>, vector<1x64xf32>
    %104 = vector.broadcast %103 : vector<1x64xf32> to vector<16x64xf32>
    %105 = arith.addf %102, %104 : vector<16x64xf32>
    %cst_41 = arith.constant 0.000000e+00 : f32
    %106 = vector.broadcast %cst_41 : f32 to vector<16x64xf32>
    %107 = arith.maximumf %105, %106 : vector<16x64xf32>
    %c0_42 = arith.constant 0 : index
    %c0_43 = arith.constant 0 : index
    %108 = vector.load %arg9[%c0_42, %c0_43] : memref<64x32xbf16, #tpu.memory_space<vmem>>, vector<64x32xbf16>
    %109 = arith.truncf %107 : vector<16x64xf32> to vector<16x64xbf16>
    %cst_44 = arith.constant dense<0.000000e+00> : vector<16x32xf32>
    %110 = tpu.matmul %109, %108, %cst_44 {dimension_numbers = #tpu.dot_dimension_numbers<[1], [0], [0], [1], [0, 0, 1, 1], [], []>} : vector<16x64xbf16>, vector<64x32xbf16>, vector<16x32xf32> -> vector<16x32xf32>
    %111 = vector.extract_strided_slice %68 {offsets = [3, 0], sizes = [1, 32], strides = [1, 1]} : vector<8x32xf32> to vector<1x32xf32>
    %112 = vector.broadcast %111 : vector<1x32xf32> to vector<16x32xf32>
    %113 = arith.addf %110, %112 : vector<16x32xf32>
    %114 = arith.addf %99, %113 : vector<16x32xf32>
    %115 = vector.extract_strided_slice %68 {offsets = [4, 0], sizes = [1, 32], strides = [1, 1]} : vector<8x32xf32> to vector<1x32xf32>
    %116 = vector.extract_strided_slice %68 {offsets = [5, 0], sizes = [1, 32], strides = [1, 1]} : vector<8x32xf32> to vector<1x32xf32>
    %cst_45 = arith.constant dense<0.000000e+00> : vector<16xf32>
    %117 = vector.multi_reduction <add>, %114, %cst_45 [1] : vector<16x32xf32> to vector<16xf32>
    %118 = vector.shape_cast %117 : vector<16xf32> to vector<16x1xf32>
    %cst_46 = arith.constant 3.200000e+01 : f32
    %119 = vector.broadcast %cst_46 : f32 to vector<16x1xf32>
    %120 = arith.divf %118, %119 : vector<16x1xf32>
    %121 = vector.broadcast %120 : vector<16x1xf32> to vector<16x32xf32>
    %122 = arith.subf %114, %121 : vector<16x32xf32>
    %123 = arith.mulf %122, %122 : vector<16x32xf32>
    %cst_47 = arith.constant dense<0.000000e+00> : vector<16xf32>
    %124 = vector.multi_reduction <add>, %123, %cst_47 [1] : vector<16x32xf32> to vector<16xf32>
    %125 = vector.shape_cast %124 : vector<16xf32> to vector<16x1xf32>
    %cst_48 = arith.constant 3.200000e+01 : f32
    %126 = vector.broadcast %cst_48 : f32 to vector<16x1xf32>
    %127 = arith.divf %125, %126 : vector<16x1xf32>
    %128 = vector.broadcast %120 : vector<16x1xf32> to vector<16x32xf32>
    %129 = arith.subf %114, %128 : vector<16x32xf32>
    %cst_49 = arith.constant 9.99999974E-6 : f32
    %130 = vector.broadcast %cst_49 : f32 to vector<16x1xf32>
    %131 = arith.addf %127, %130 : vector<16x1xf32>
    %132 = math.rsqrt %131 : vector<16x1xf32>
    %133 = vector.broadcast %132 : vector<16x1xf32> to vector<16x32xf32>
    %134 = arith.mulf %129, %133 : vector<16x32xf32>
    %135 = vector.broadcast %115 : vector<1x32xf32> to vector<16x32xf32>
    %136 = arith.mulf %134, %135 : vector<16x32xf32>
    %137 = vector.broadcast %116 : vector<1x32xf32> to vector<16x32xf32>
    %138 = arith.addf %136, %137 : vector<16x32xf32>
    %139 = tpu.concatenate %138, %50 in 1 : vector<16x32xf32>, vector<16x32xf32> -> vector<16x64xf32>
    %c0_50 = arith.constant 0 : index
    %c0_51 = arith.constant 0 : index
    %140 = vector.load %arg11[%c0_50, %c0_51] : memref<16x64xf32, #tpu.memory_space<vmem>>, vector<16x64xf32>
    tpu.vector_store %arg11[%c0_50, %c0_51], %139 {strides = array<i32>} : memref<16x64xf32, #tpu.memory_space<vmem>>, vector<16x64xf32>,
    return
  }
}

</mosaic_0001>

<llo_original>
// kernel: run.1
$region0: #{run.1}
  #allocation0 [shape = 'u32[]', space=smem, size = 0x4, offset = 0x4, fixed_abs, tag = 'smem constant byte address 0x4 - core index']
  #allocation1 [shape = 'u32[144,128]{1,0:T(1,128)}', space=vmem, size = 0x12000, scoped, tag = 'internal scratch']
  %s0 = inlined_call_operand.hbm [shape: f32[16,32], index: 0, kind: input, shape index: {}]
  %s1 = inlined_call_operand.vmem [shape: bf16[32,288], index: 1, kind: input, shape index: {}]
  %s2 = inlined_call_operand.vmem [shape: f32[1,288], index: 2, kind: input, shape index: {}]
  %s3 = inlined_call_operand.vmem [shape: bf16[256,128], index: 3, kind: input, shape index: {}]
  %s4 = inlined_call_operand.hbm [shape: bf16[64,64], index: 4, kind: input, shape index: {}]
  %s5 = inlined_call_operand.hbm [shape: bf16[64,64], index: 5, kind: input, shape index: {}]
  %s6 = inlined_call_operand.hbm [shape: bf16[32,32], index: 6, kind: input, shape index: {}]
  %s7 = inlined_call_operand.hbm [shape: bf16[32,64], index: 7, kind: input, shape index: {}]
  %s8 = inlined_call_operand.hbm [shape: f32[1,64], index: 8, kind: input, shape index: {}]
  %s9 = inlined_call_operand.vmem [shape: bf16[64,32], index: 9, kind: input, shape index: {}]
  %s10 = inlined_call_operand.hbm [shape: f32[8,32], index: 10, kind: input, shape index: {}]
  %s11 = inlined_call_operand.vmem [shape: f32[16,64], index: 11, kind: output, shape index: {}]
  %s12 = sld [smem:[#allocation0]]
  $region82: #{run.1} parent=0
    _
  %s14 = ssub.s32 1, %s12
  %s15 = scalar_select 0, %s14, %s12
  $region1: #{run.1} parent=0
    #allocation2 [shape = 'u8[8192]{0}', space=vmem, size = 0x2000, scoped, tag = 'input window, operand 0, single buffered']
    #allocation3 [shape = 's32[1]{0}', space=sflag, size = 0x4, scoped, tag = 'scoped memory for run.1']
    #allocation4 [shape = 'u8[16384]{0}', space=vmem, size = 0x4000, scoped, tag = 'input window, operand 4, single buffered']
    #allocation5 [shape = 's32[1]{0}', space=sflag, size = 0x4, scoped, tag = 'scoped memory for run.1']
    #allocation6 [shape = 'u8[16384]{0}', space=vmem, size = 0x4000, scoped, tag = 'input window, operand 5, single buffered']
    #allocation7 [shape = 'u8[8192]{0}', space=vmem, size = 0x2000, scoped, tag = 'input window, operand 6, single buffered']
    #allocation8 [shape = 's32[1]{0}', space=sflag, size = 0x4, scoped, tag = 'scoped memory for run.1']
    #allocation9 [shape = 'u8[8192]{0}', space=vmem, size = 0x2000, scoped, tag = 'input window, operand 7, single buffered']
    #allocation10 [shape = 'u8[512]{0}', space=vmem, size = 0x400, scoped, tag = 'input window, operand 8, single buffered']
    #allocation11 [shape = 's32[1]{0}', space=sflag, size = 0x4, scoped, tag = 'scoped memory for run.1']
    #allocation12 [shape = 'u8[4096]{0}', space=vmem, size = 0x1000, scoped, tag = 'input window, operand 10, single buffered']
    %16 = vsyncpa [#allocation3], 0
    %17 = vsyncpa [#allocation5], 0
    %18 = vsyncpa [#allocation8], 0
    %19 = vsyncpa [#allocation11], 0
    // Predicated region
    $region2: #{run.1} parent=1 // pred_check
      _
    $region3: #{run.1} parent=1 // pred_check_branch
      %21 = sbr.rel (0) target = $region5
    $region4: #{run.1} parent=1 // pred_region
      %s23 = ssub.s32 256, 256
      %24 = vsyncadd [#allocation3], %s23
      %s25 = sshll.u32 [#allocation2], 4
      %s26 = int_to_ptr.vmem [resolvable:$true] %s25
      %31 = dma.hbm_to_vmem [thread:$0]  %s0, 256, %s26, [#allocation3], 128, 128, 8
    $region5: #{run.1} parent=1 // pred_fallthru
      _
    // Predicated region
    $region6: #{run.1} parent=1 // pred_check
      _
    $region7: #{run.1} parent=1 // pred_check_branch
      %33 = sbr.rel (0) target = $region9
    $region8: #{run.1} parent=1 // pred_region
      _
    $region9: #{run.1} parent=1 // pred_fallthru
      _
    // Predicated region
    $region10: #{run.1} parent=1 // pred_check
      _
    $region11: #{run.1} parent=1 // pred_check_branch
      %35 = sbr.rel (0) target = $region13
    $region12: #{run.1} parent=1 // pred_region
      _
    $region13: #{run.1} parent=1 // pred_fallthru
      _
    // Predicated region
    $region14: #{run.1} parent=1 // pred_check
      _
    $region15: #{run.1} parent=1 // pred_check_branch
      %37 = sbr.rel (0) target = $region17
    $region16: #{run.1} parent=1 // pred_region
      _
    $region17: #{run.1} parent=1 // pred_fallthru
      _
    // Predicated region
    $region18: #{run.1} parent=1 // pred_check
      _
    $region19: #{run.1} parent=1 // pred_check_branch
      %39 = sbr.rel (0) target = $region21
    $region20: #{run.1} parent=1 // pred_region
      %s41 = ssub.s32 512, 512
      %42 = vsyncadd [#allocation5], %s41
      %s43 = sshll.u32 [#allocation4], 4
      %s44 = int_to_ptr.vmem [resolvable:$true] %s43
      %49 = dma.hbm_to_vmem [thread:$0]  %s4, 512, %s44, [#allocation5], 64, 64, 4
    $region21: #{run.1} parent=1 // pred_fallthru
      _
    // Predicated region
    $region22: #{run.1} parent=1 // pred_check
      _
    $region23: #{run.1} parent=1 // pred_check_branch
      %51 = sbr.rel (0) target = $region25
    $region24: #{run.1} parent=1 // pred_region
      %s53 = ssub.s32 512, 512
      %54 = vsyncadd [#allocation5], %s53
      %s55 = sshll.u32 [#allocation6], 4
      %s56 = int_to_ptr.vmem [resolvable:$true] %s55
      %61 = dma.hbm_to_vmem [thread:$0]  %s5, 512, %s56, [#allocation5], 64, 64, 4
    $region25: #{run.1} parent=1 // pred_fallthru
      _
    // Predicated region
    $region26: #{run.1} parent=1 // pred_check
      _
    $region27: #{run.1} parent=1 // pred_check_branch
      %63 = sbr.rel (0) target = $region29
    $region28: #{run.1} parent=1 // pred_region
      %s65 = ssub.s32 256, 256
      %66 = vsyncadd [#allocation8], %s65
      %s67 = sshll.u32 [#allocation7], 4
      %s68 = int_to_ptr.vmem [resolvable:$true] %s67
      %73 = dma.hbm_to_vmem [thread:$0]  %s6, 256, %s68, [#allocation8], 64, 64, 4
    $region29: #{run.1} parent=1 // pred_fallthru
      _
    // Predicated region
    $region30: #{run.1} parent=1 // pred_check
      _
    $region31: #{run.1} parent=1 // pred_check_branch
      %75 = sbr.rel (0) target = $region33
    $region32: #{run.1} parent=1 // pred_region
      %s77 = ssub.s32 256, 256
      %78 = vsyncadd [#allocation8], %s77
      %s79 = sshll.u32 [#allocation9], 4
      %s80 = int_to_ptr.vmem [resolvable:$true] %s79
      %85 = dma.hbm_to_vmem [thread:$0]  %s7, 256, %s80, [#allocation8], 64, 64, 4
    $region33: #{run.1} parent=1 // pred_fallthru
      _
    // Predicated region
    $region34: #{run.1} parent=1 // pred_check
      _
    $region35: #{run.1} parent=1 // pred_check_branch
      %87 = sbr.rel (0) target = $region37
    $region36: #{run.1} parent=1 // pred_region
      %s89 = ssub.s32 16, 16
      %90 = vsyncadd [#allocation11], %s89
      %s92 = sshll.u32 [#allocation10], 4
      %s93 = int_to_ptr.vmem [resolvable:$true] %s92
      %95 = dma.hbm_to_vmem [thread:$0]  %s8, 16, %s93, [#allocation11]
    $region37: #{run.1} parent=1 // pred_fallthru
      _
    // Predicated region
    $region38: #{run.1} parent=1 // pred_check
      _
    $region39: #{run.1} parent=1 // pred_check_branch
      %97 = sbr.rel (0) target = $region41
    $region40: #{run.1} parent=1 // pred_region
      _
    $region41: #{run.1} parent=1 // pred_fallthru
      _
    // Predicated region
    $region42: #{run.1} parent=1 // pred_check
      _
    $region43: #{run.1} parent=1 // pred_check_branch
      %99 = sbr.rel (0) target = $region45
    $region44: #{run.1} parent=1 // pred_region
      %s101 = ssub.s32 128, 128
      %102 = vsyncadd [#allocation11], %s101
      %s104 = sshll.u32 [#allocation12], 4
      %s105 = int_to_ptr.vmem [resolvable:$true] %s104
      %107 = dma.hbm_to_vmem [thread:$0]  %s10, 128, %s105, [#allocation11]
    $region45: #{run.1} parent=1 // pred_fallthru
      _
    // Predicated region
    $region46: #{run.1} parent=1 // pred_check
      _
    $region47: #{run.1} parent=1 // pred_check_branch
      %109 = sbr.rel (0) target = $region49
    $region48: #{run.1} parent=1 // pred_region
      %110 = dma.done [#allocation3], 256
    $region49: #{run.1} parent=1 // pred_fallthru
      _
    // Predicated region
    $region50: #{run.1} parent=1 // pred_check
      _
    $region51: #{run.1} parent=1 // pred_check_branch
      %112 = sbr.rel (0) target = $region53
    $region52: #{run.1} parent=1 // pred_region
      %113 = dma.done [#allocation5], 512
    $region53: #{run.1} parent=1 // pred_fallthru
      _
    // Predicated region
    $region54: #{run.1} parent=1 // pred_check
      _
    $region55: #{run.1} parent=1 // pred_check_branch
      %115 = sbr.rel (0) target = $region57
    $region56: #{run.1} parent=1 // pred_region
      %116 = dma.done [#allocation5], 512
    $region57: #{run.1} parent=1 // pred_fallthru
      _
    // Predicated region
    $region58: #{run.1} parent=1 // pred_check
      _
    $region59: #{run.1} parent=1 // pred_check_branch
      %118 = sbr.rel (0) target = $region61
    $region60: #{run.1} parent=1 // pred_region
      %119 = dma.done [#allocation8], 256
    $region61: #{run.1} parent=1 // pred_fallthru
      _
    // Predicated region
    $region62: #{run.1} parent=1 // pred_check
      _
    $region63: #{run.1} parent=1 // pred_check_branch
      %121 = sbr.rel (0) target = $region65
    $region64: #{run.1} parent=1 // pred_region
      %122 = dma.done [#allocation8], 256
    $region65: #{run.1} parent=1 // pred_fallthru
      _
    // Predicated region
    $region66: #{run.1} parent=1 // pred_check
      _
    $region67: #{run.1} parent=1 // pred_check_branch
      %124 = sbr.rel (0) target = $region69
    $region68: #{run.1} parent=1 // pred_region
      %125 = dma.done [#allocation11], 16
    $region69: #{run.1} parent=1 // pred_fallthru
      _
    // Predicated region
    $region70: #{run.1} parent=1 // pred_check
      _
    $region71: #{run.1} parent=1 // pred_check_branch
      %127 = sbr.rel (0) target = $region73
    $region72: #{run.1} parent=1 // pred_region
      %128 = dma.done [#allocation11], 128
    $region73: #{run.1} parent=1 // pred_fallthru
      _
    %v130 = vld [vmem:[#allocation4] sm:$0xf]
    %v131 = vld [vmem:[#allocation4 + $0x4] sm:$0xf]
    %v132 = vld [vmem:[#allocation4 + $0x8] sm:$0xf]
    %v133 = vld [vmem:[#allocation4 + $0xc] sm:$0xf]
    %v134 = vld [vmem:[#allocation4 + $0x10] sm:$0xf]
    %v135 = vld [vmem:[#allocation4 + $0x14] sm:$0xf]
    %v136 = vld [vmem:[#allocation4 + $0x18] sm:$0xf]
    %v137 = vld [vmem:[#allocation4 + $0x1c] sm:$0xf]
    %v138 = vld [vmem:[#allocation2] sm:$0xff]
    %v139 = vld [vmem:[#allocation2 + $0x8] sm:$0xff]
    %v140 = vpack.c.bf16 %v139, %v138
    %v141 = vld [vmem:[%s1] sm:$0xff]
    %v142 = vld [vmem:[%s1 + $0x8] sm:$0xf]
    %v143 = vld [vmem:[%s1 + $0xc] sm:$0xff]
    %v144 = vld [vmem:[%s1 + $0x14] sm:$0xf]
    %v145 = vld [vmem:[%s1 + $0x18] sm:$0xff]
    %v146 = vld [vmem:[%s1 + $0x20] sm:$0xf]
    %v147 = vld [vmem:[%s1 + $0x24] sm:$0xff]
    %v148 = vld [vmem:[%s1 + $0x2c] sm:$0xf]
    %v149 = vld [vmem:[%s2] sm:$0x7]
    %v151 = vlaneseq
    %v152 = vshrl.u32 %v151, 7
    %v153 = vsub.s32 0, %v152
    %v154 = vrot.slane %v149, %v153
    %v155 = vlaneseq
    %v156 = vshrl.u32 %v155, 7
    %v157 = vsub.s32 1, %v156
    %v158 = vrot.slane %v149, %v157
    %v159 = vlaneseq
    %v160 = vshrl.u32 %v159, 7
    %v161 = vsub.s32 2, %v160
    %v162 = vrot.slane %v149, %v161
    %v174 = vunpack.c.l.b16 %v141
    %v175 = vunpack.c.h.b16 %v141
    %v176 = vunpack.c.l.b16 %v142
    %v177 = vunpack.c.l.b16 %v143
    %v178 = vunpack.c.h.b16 %v143
    %v179 = vunpack.c.l.b16 %v144
    %v180 = vunpack.c.l.b16 %v145
    %v181 = vunpack.c.h.b16 %v145
    %v182 = vunpack.c.l.b16 %v146
    %v183 = vunpack.c.l.b16 %v147
    %v184 = vunpack.c.h.b16 %v147
    %v185 = vunpack.c.l.b16 %v148
    %v186 = vpack.c.b16 %v177, %v174
    %v187 = vpack.c.b16 %v178, %v175
    %v188 = vpack.c.b16 %v179, %v176
    %v189 = vpack.c.b16 %v183, %v180
    %v190 = vpack.c.b16 %v184, %v181
    %v191 = vpack.c.b16 %v185, %v182
    %vm198 = vcmask 261120
    %v200 = vsel %vm198, %v140, 0
    %202 = vmatprep.subr.bf16.mxu0 %v187
    %203 = vmatpush1.bf16.msra.mxu0 %v186
    %204 = vmatprep.subr.bf16.mxu0 %v190
    %205 = vmatpush1.bf16.msra.mxu0 %v189
    %206 = vmatprep.subr.bf16.mxu0 0
    %207 = vmatpush1.bf16.msra.mxu0 0
    %208 = vmatprep.subr.bf16.mxu0 0
    %209 = vmatpush1.bf16.msra.mxu0 0
    %210 = vmatprep.subr.bf16.mxu0 0
    %211 = vmatpush1.bf16.msra.mxu0 0
    %212 = vmatprep.subr.bf16.mxu0 0
    %213 = vmatpush1.bf16.msra.mxu0 0
    %214 = vmatprep.subr.bf16.mxu0 0
    %215 = vmatpush1.bf16.msra.mxu0 0
    %216 = vmatprep.subr.bf16.mxu0 0
    %217 = vmatpush1.bf16.msra.mxu0 0
    %218 = vmatprep.subr.bf16.mxu0 0
    %219 = vmatpush1.bf16.msra.mxu0 0
    %220 = vmatprep.subr.bf16.mxu0 0
    %221 = vmatpush1.bf16.msra.mxu0 0
    %222 = vmatprep.subr.bf16.mxu0 0
    %223 = vmatpush1.bf16.msra.mxu0 0
    %224 = vmatprep.subr.bf16.mxu0 0
    %225 = vmatpush1.bf16.msra.mxu0 0
    %226 = vmatprep.subr.bf16.mxu0 0
    %227 = vmatpush1.bf16.msra.mxu0 0
    %228 = vmatprep.subr.bf16.mxu0 0
    %229 = vmatpush1.bf16.msra.mxu0 0
    %230 = vmatprep.subr.bf16.mxu0 0
    %231 = vmatpush1.bf16.msra.mxu0 0
    %232 = vmatprep.subr.bf16.mxu0 0
    %233 = vmatpush1.bf16.msra.mxu0 0
    %234 = vmatprep.mubr.bf16.mxu0 0
    %235 = vmatmul.mubr.bf16.gmra.mrb[0].mxu0 %v200
    %v236 = vpop.f32.mrb[0].mxu0
    %v237 = vadd.f32 %v154, %v236
    %v238 = vpop.f32.mrb[0].mxu0
    %v239 = vadd.f32 %v158, %v238
    %v240 = vpop.f32.mrb[0].mxu0
    %v241 = vadd.f32 %v154, %v240
    %v242 = vpop.f32.mrb[0].mxu0
    %v243 = vadd.f32 %v158, %v242
    %244 = vdwg.mxu0
    %245 = vmatprep.subr.bf16.mxu0 0
    %246 = vmatpush1.bf16.msra.mxu0 %v188
    %247 = vmatprep.subr.bf16.mxu0 0
    %248 = vmatpush1.bf16.msra.mxu0 %v191
    %249 = vmatprep.subr.bf16.mxu0 0
    %250 = vmatpush1.bf16.msra.mxu0 0
    %251 = vmatprep.subr.bf16.mxu0 0
    %252 = vmatpush1.bf16.msra.mxu0 0
    %253 = vmatprep.subr.bf16.mxu0 0
    %254 = vmatpush1.bf16.msra.mxu0 0
    %255 = vmatprep.subr.bf16.mxu0 0
    %256 = vmatpush1.bf16.msra.mxu0 0
    %257 = vmatprep.subr.bf16.mxu0 0
    %258 = vmatpush1.bf16.msra.mxu0 0
    %259 = vmatprep.subr.bf16.mxu0 0
    %260 = vmatpush1.bf16.msra.mxu0 0
    %261 = vmatprep.subr.bf16.mxu0 0
    %262 = vmatpush1.bf16.msra.mxu0 0
    %263 = vmatprep.subr.bf16.mxu0 0
    %264 = vmatpush1.bf16.msra.mxu0 0
    %265 = vmatprep.subr.bf16.mxu0 0
    %266 = vmatpush1.bf16.msra.mxu0 0
    %267 = vmatprep.subr.bf16.mxu0 0
    %268 = vmatpush1.bf16.msra.mxu0 0
    %269 = vmatprep.subr.bf16.mxu0 0
    %270 = vmatpush1.bf16.msra.mxu0 0
    %271 = vmatprep.subr.bf16.mxu0 0
    %272 = vmatpush1.bf16.msra.mxu0 0
    %273 = vmatprep.subr.bf16.mxu0 0
    %274 = vmatpush1.bf16.msra.mxu0 0
    %275 = vmatprep.subr.bf16.mxu0 0
    %276 = vmatpush1.bf16.msra.mxu0 0
    %277 = vmatprep.mubr.bf16.mxu0 0
    %278 = vmatmul.mubr.bf16.gmra.mrb[0].mxu0 %v200
    %v279 = vpop.f32.mrb[0].mxu0
    %v280 = vadd.f32 %v162, %v279
    %v281 = vpop.f32.mrb[0].mxu0
    %v282 = vpop.f32.mrb[0].mxu0
    %v283 = vadd.f32 %v162, %v282
    %v284 = vpop.f32.mrb[0].mxu0
    %285 = vdwg.mxu0
    %v286 = vpack.c.bf16 %v243, %v239
    %v287 = vld [vmem:[%s3] sm:$0xf]
    %v288 = vld [vmem:[%s3 + $0x4] sm:$0xf]
    %v289 = vld [vmem:[%s3 + $0x8] sm:$0xf]
    %v290 = vld [vmem:[%s3 + $0xc] sm:$0xf]
    %v291 = vld [vmem:[%s3 + $0x10] sm:$0xf]
    %v292 = vld [vmem:[%s3 + $0x14] sm:$0xf]
    %v293 = vld [vmem:[%s3 + $0x18] sm:$0xf]
    %v294 = vld [vmem:[%s3 + $0x1c] sm:$0xf]
    %v295 = vld [vmem:[%s3 + $0x20] sm:$0xf]
    %v296 = vld [vmem:[%s3 + $0x24] sm:$0xf]
    %v297 = vld [vmem:[%s3 + $0x28] sm:$0xf]
    %v298 = vld [vmem:[%s3 + $0x2c] sm:$0xf]
    %v299 = vld [vmem:[%s3 + $0x30] sm:$0xf]
    %v300 = vld [vmem:[%s3 + $0x34] sm:$0xf]
    %v301 = vld [vmem:[%s3 + $0x38] sm:$0xf]
    %v302 = vld [vmem:[%s3 + $0x3c] sm:$0xf]
    %v303 = vld [vmem:[%s3 + $0x40] sm:$0xf]
    %v304 = vld [vmem:[%s3 + $0x44] sm:$0xf]
    %v305 = vld [vmem:[%s3 + $0x48] sm:$0xf]
    %v306 = vld [vmem:[%s3 + $0x4c] sm:$0xf]
    %v307 = vld [vmem:[%s3 + $0x50] sm:$0xf]
    %v308 = vld [vmem:[%s3 + $0x54] sm:$0xf]
    %v309 = vld [vmem:[%s3 + $0x58] sm:$0xf]
    %v310 = vld [vmem:[%s3 + $0x5c] sm:$0xf]
    %v311 = vld [vmem:[%s3 + $0x60] sm:$0xf]
    %v312 = vld [vmem:[%s3 + $0x64] sm:$0xf]
    %v313 = vld [vmem:[%s3 + $0x68] sm:$0xf]
    %v314 = vld [vmem:[%s3 + $0x6c] sm:$0xf]
    %v315 = vld [vmem:[%s3 + $0x70] sm:$0xf]
    %v316 = vld [vmem:[%s3 + $0x74] sm:$0xf]
    %v317 = vld [vmem:[%s3 + $0x78] sm:$0xf]
    %v318 = vld [vmem:[%s3 + $0x7c] sm:$0xf]
    %v351 = vunpack.c.l.b16 %v287
    %v352 = vunpack.c.l.b16 %v288
    %v353 = vunpack.c.l.b16 %v289
    %v354 = vunpack.c.l.b16 %v290
    %v355 = vunpack.c.l.b16 %v291
    %v356 = vunpack.c.l.b16 %v292
    %v357 = vunpack.c.l.b16 %v293
    %v358 = vunpack.c.l.b16 %v294
    %v359 = vunpack.c.l.b16 %v295
    %v360 = vunpack.c.l.b16 %v296
    %v361 = vunpack.c.l.b16 %v297
    %v362 = vunpack.c.l.b16 %v298
    %v363 = vunpack.c.l.b16 %v299
    %v364 = vunpack.c.l.b16 %v300
    %v365 = vunpack.c.l.b16 %v301
    %v366 = vunpack.c.l.b16 %v302
    %v367 = vunpack.c.l.b16 %v303
    %v368 = vunpack.c.l.b16 %v304
    %v369 = vunpack.c.l.b16 %v305
    %v370 = vunpack.c.l.b16 %v306
    %v371 = vunpack.c.l.b16 %v307
    %v372 = vunpack.c.l.b16 %v308
    %v373 = vunpack.c.l.b16 %v309
    %v374 = vunpack.c.l.b16 %v310
    %v375 = vunpack.c.l.b16 %v311
    %v376 = vunpack.c.l.b16 %v312
    %v377 = vunpack.c.l.b16 %v313
    %v378 = vunpack.c.l.b16 %v314
    %v379 = vunpack.c.l.b16 %v315
    %v380 = vunpack.c.l.b16 %v316
    %v381 = vunpack.c.l.b16 %v317
    %v382 = vunpack.c.l.b16 %v318
    %v383 = vpack.c.b16 %v352, %v351
    %v384 = vpack.c.b16 %v354, %v353
    %v385 = vpack.c.b16 %v356, %v355
    %v386 = vpack.c.b16 %v358, %v357
    %v387 = vpack.c.b16 %v360, %v359
    %v388 = vpack.c.b16 %v362, %v361
    %v389 = vpack.c.b16 %v364, %v363
    %v390 = vpack.c.b16 %v366, %v365
    %v391 = vpack.c.b16 %v368, %v367
    %v392 = vpack.c.b16 %v370, %v369
    %v393 = vpack.c.b16 %v372, %v371
    %v394 = vpack.c.b16 %v374, %v373
    %v395 = vpack.c.b16 %v376, %v375
    %v396 = vpack.c.b16 %v378, %v377
    %v397 = vpack.c.b16 %v380, %v379
    %v398 = vpack.c.b16 %v382, %v381
    %v415 = vmul.bf16 %v286, %v383
    %v416 = vmul.bf16 %v286, %v384
    %v417 = vmul.bf16 %v286, %v385
    %v418 = vmul.bf16 %v286, %v386
    %v419 = vmul.bf16 %v286, %v387
    %v420 = vmul.bf16 %v286, %v388
    %v421 = vmul.bf16 %v286, %v389
    %v422 = vmul.bf16 %v286, %v390
    %v423 = vmul.bf16 %v286, %v391
    %v424 = vmul.bf16 %v286, %v392
    %v425 = vmul.bf16 %v286, %v393
    %v426 = vmul.bf16 %v286, %v394
    %v427 = vmul.bf16 %v286, %v395
    %v428 = vmul.bf16 %v286, %v396
    %v429 = vmul.bf16 %v286, %v397
    %v430 = vmul.bf16 %v286, %v398
    %v431 = vpack.c.bf16 %v241, %v237
    %432 = vmatprep.subr.bf16.mxu0 0
    %433 = vmatpush1.bf16.xpose.msra.mxu0 %v415
    %434 = vmatprep.subr.bf16.mxu0 0
    %435 = vmatpush1.bf16.xpose.msra.mxu0 %v416
    %436 = vmatprep.subr.bf16.mxu0 0
    %437 = vmatpush1.bf16.xpose.msra.mxu0 %v417
    %438 = vmatprep.subr.bf16.mxu0 0
    %439 = vmatpush1.bf16.xpose.msra.mxu0 %v418
    %440 = vmatprep.subr.bf16.mxu0 0
    %441 = vmatpush1.bf16.xpose.msra.mxu0 %v419
    %442 = vmatprep.subr.bf16.mxu0 0
    %443 = vmatpush1.bf16.xpose.msra.mxu0 %v420
    %444 = vmatprep.subr.bf16.mxu0 0
    %445 = vmatpush1.bf16.xpose.msra.mxu0 %v421
    %446 = vmatprep.subr.bf16.mxu0 0
    %447 = vmatpush1.bf16.xpose.msra.mxu0 %v422
    %448 = vmatprep.subr.bf16.mxu0 0
    %449 = vmatpush1.bf16.xpose.msra.mxu0 %v423
    %450 = vmatprep.subr.bf16.mxu0 0
    %451 = vmatpush1.bf16.xpose.msra.mxu0 %v424
    %452 = vmatprep.subr.bf16.mxu0 0
    %453 = vmatpush1.bf16.xpose.msra.mxu0 %v425
    %454 = vmatprep.subr.bf16.mxu0 0
    %455 = vmatpush1.bf16.xpose.msra.mxu0 %v426
    %456 = vmatprep.subr.bf16.mxu0 0
    %457 = vmatpush1.bf16.xpose.msra.mxu0 %v427
    %458 = vmatprep.subr.bf16.mxu0 0
    %459 = vmatpush1.bf16.xpose.msra.mxu0 %v428
    %460 = vmatprep.subr.bf16.mxu0 0
    %461 = vmatpush1.bf16.xpose.msra.mxu0 %v429
    %462 = vmatprep.subr.bf16.mxu0 0
    %463 = vmatpush1.bf16.xpose.msra.mxu0 %v430
    %464 = vmatprep.mubr.bf16.mxu0 0
    %465 = vmatmul.mubr.bf16.gmra.mrb[0].mxu0 %v431
    %v466 = vpop.f32.mrb[0].mxu0
    %v467 = vadd.f32 0.0, %v466
    %v468 = vpop.f32.mrb[0].mxu0
    %v469 = vadd.f32 0.0, %v468
    %v470 = vpop.f32.mrb[0].mxu0
    %v471 = vadd.f32 0.0, %v470
    %v472 = vpop.f32.mrb[0].mxu0
    %v473 = vadd.f32 0.0, %v472
    %474 = vdwg.mxu0
    %vm475 = vcmask 1048064
    %v476 = vsel %vm475, %v467, -inf
    %477 = vmax.xlane.f32.xlu0 %v476
    %v478 = vpop.xlane.xlu0 %477
    %v479 = vsel %vm475, %v471, -inf
    %480 = vmax.xlane.f32.xlu0 %v479
    %v481 = vpop.xlane.xlu0 %480
    %v482 = vsub.f32 %v467, %v478
    %v483 = vsub.f32 %v471, %v481
    %v484 = vmul.f32 %v482, 1.442695
    %v485 = vpow.pop %v484
    %v486 = vmul.f32 %v483, 1.442695
    %v487 = vpow.pop %v486
    %v488 = vpack.c.bf16 %v487, %v485
    %490 = vrot.lane.b32.xlu0 %v488, 64
    %v491 = vpop.permute.xlu0 %490
    %v500 = vunpack.c.l.b16 %v130
    %v501 = vunpack.c.l.b16 %v131
    %v502 = vunpack.c.l.b16 %v132
    %v503 = vunpack.c.l.b16 %v133
    %v504 = vunpack.c.l.b16 %v134
    %v505 = vunpack.c.l.b16 %v135
    %v506 = vunpack.c.l.b16 %v136
    %v507 = vunpack.c.l.b16 %v137
    %v508 = vpack.c.b16 %v501, %v500
    %v509 = vpack.c.b16 %v503, %v502
    %v510 = vpack.c.b16 %v505, %v504
    %v511 = vpack.c.b16 %v507, %v506
    %vm516 = vcmask 523264
    %v518 = vsel %vm516, %v491, 0
    %520 = vmatprep.subr.bf16.mxu0 0
    %521 = vmatpush1.bf16.msra.mxu0 %v508
    %522 = vmatprep.subr.bf16.mxu0 0
    %523 = vmatpush1.bf16.msra.mxu0 %v509
    %524 = vmatprep.subr.bf16.mxu0 0
    %525 = vmatpush1.bf16.msra.mxu0 %v510
    %526 = vmatprep.subr.bf16.mxu0 0
    %527 = vmatpush1.bf16.msra.mxu0 %v511
    %528 = vmatprep.subr.bf16.mxu0 0
    %529 = vmatpush1.bf16.msra.mxu0 0
    %530 = vmatprep.subr.bf16.mxu0 0
    %531 = vmatpush1.bf16.msra.mxu0 0
    %532 = vmatprep.subr.bf16.mxu0 0
    %533 = vmatpush1.bf16.msra.mxu0 0
    %534 = vmatprep.subr.bf16.mxu0 0
    %535 = vmatpush1.bf16.msra.mxu0 0
    %536 = vmatprep.subr.bf16.mxu0 0
    %537 = vmatpush1.bf16.msra.mxu0 0
    %538 = vmatprep.subr.bf16.mxu0 0
    %539 = vmatpush1.bf16.msra.mxu0 0
    %540 = vmatprep.subr.bf16.mxu0 0
    %541 = vmatpush1.bf16.msra.mxu0 0
    %542 = vmatprep.subr.bf16.mxu0 0
    %543 = vmatpush1.bf16.msra.mxu0 0
    %544 = vmatprep.subr.bf16.mxu0 0
    %545 = vmatpush1.bf16.msra.mxu0 0
    %546 = vmatprep.subr.bf16.mxu0 0
    %547 = vmatpush1.bf16.msra.mxu0 0
    %548 = vmatprep.subr.bf16.mxu0 0
    %549 = vmatpush1.bf16.msra.mxu0 0
    %550 = vmatprep.subr.bf16.mxu0 0
    %551 = vmatpush1.bf16.msra.mxu0 0
    %552 = vmatprep.mubr.bf16.mxu0 0
    %553 = vmatmul.mubr.bf16.gmra.mrb[0].mxu0 %v518
    %v554 = vpop.f32.mrb[0].mxu0
    %v555 = vadd.f32 0.0, %v554
    %v556 = vpop.f32.mrb[0].mxu0
    %v557 = vpop.f32.mrb[0].mxu0
    %v558 = vadd.f32 0.0, %v557
    %v559 = vpop.f32.mrb[0].mxu0
    %560 = vdwg.mxu0
    %v561 = vrcp.pop %v555
    %v562 = vrcp.pop %v558
    %565 = vrot.lane.b32.xlu0 %v561, 64
    %v566 = vpop.permute.xlu0 %565
    %567 = vrot.lane.b32.xlu0 %v562, 64
    %v568 = vpop.permute.xlu0 %567
    %v571 = vmul.f32 %v485, %v566
    %v572 = vmul.f32 %v487, %v568
    %v573 = vsel %vm516, %v469, -inf
    %574 = vmax.xlane.f32.xlu0 %v573
    %v575 = vpop.xlane.xlu0 %574
    %v576 = vsel %vm516, %v473, -inf
    %577 = vmax.xlane.f32.xlu0 %v576
    %v578 = vpop.xlane.xlu0 %577
    %v579 = vsub.f32 %v469, %v575
    %v580 = vsub.f32 %v473, %v578
    %v581 = vmul.f32 %v579, 1.442695
    %v582 = vpow.pop %v581
    %v583 = vmul.f32 %v580, 1.442695
    %v584 = vpow.pop %v583
    %v585 = vpack.c.bf16 %v584, %v582
    %v587 = vsel %vm516, %v585, 0
    %589 = vmatprep.subr.bf16.mxu0 0
    %590 = vmatpush1.bf16.msra.mxu0 %v508
    %591 = vmatprep.subr.bf16.mxu0 0
    %592 = vmatpush1.bf16.msra.mxu0 %v509
    %593 = vmatprep.subr.bf16.mxu0 0
    %594 = vmatpush1.bf16.msra.mxu0 %v510
    %595 = vmatprep.subr.bf16.mxu0 0
    %596 = vmatpush1.bf16.msra.mxu0 %v511
    %597 = vmatprep.subr.bf16.mxu0 0
    %598 = vmatpush1.bf16.msra.mxu0 0
    %599 = vmatprep.subr.bf16.mxu0 0
    %600 = vmatpush1.bf16.msra.mxu0 0
    %601 = vmatprep.subr.bf16.mxu0 0
    %602 = vmatpush1.bf16.msra.mxu0 0
    %603 = vmatprep.subr.bf16.mxu0 0
    %604 = vmatpush1.bf16.msra.mxu0 0
    %605 = vmatprep.subr.bf16.mxu0 0
    %606 = vmatpush1.bf16.msra.mxu0 0
    %607 = vmatprep.subr.bf16.mxu0 0
    %608 = vmatpush1.bf16.msra.mxu0 0
    %609 = vmatprep.subr.bf16.mxu0 0
    %610 = vmatpush1.bf16.msra.mxu0 0
    %611 = vmatprep.subr.bf16.mxu0 0
    %612 = vmatpush1.bf16.msra.mxu0 0
    %613 = vmatprep.subr.bf16.mxu0 0
    %614 = vmatpush1.bf16.msra.mxu0 0
    %615 = vmatprep.subr.bf16.mxu0 0
    %616 = vmatpush1.bf16.msra.mxu0 0
    %617 = vmatprep.subr.bf16.mxu0 0
    %618 = vmatpush1.bf16.msra.mxu0 0
    %619 = vmatprep.subr.bf16.mxu0 0
    %620 = vmatpush1.bf16.msra.mxu0 0
    %621 = vmatprep.mubr.bf16.mxu0 0
    %622 = vmatmul.mubr.bf16.gmra.mrb[0].mxu0 %v587
    %v623 = vpop.f32.mrb[0].mxu0
    %v624 = vadd.f32 0.0, %v623
    %v625 = vpop.f32.mrb[0].mxu0
    %v626 = vpop.f32.mrb[0].mxu0
    %v627 = vadd.f32 0.0, %v626
    %v628 = vpop.f32.mrb[0].mxu0
    %629 = vdwg.mxu0
    %v630 = vrcp.pop %v624
    %v631 = vrcp.pop %v627
    %v632 = vmul.f32 %v582, %v630
    %v633 = vmul.f32 %v584, %v631
    %v634 = vpack.c.bf16 %v572, %v571
    %v635 = vpack.c.bf16 %v633, %v632
    %v636 = vld [vmem:[#allocation6] sm:$0xf]
    %v637 = vld [vmem:[#allocation6 + $0x4] sm:$0xf]
    %v638 = vld [vmem:[#allocation6 + $0x8] sm:$0xf]
    %v639 = vld [vmem:[#allocation6 + $0xc] sm:$0xf]
    %v640 = vld [vmem:[#allocation6 + $0x10] sm:$0xf]
    %v641 = vld [vmem:[#allocation6 + $0x14] sm:$0xf]
    %v642 = vld [vmem:[#allocation6 + $0x18] sm:$0xf]
    %v643 = vld [vmem:[#allocation6 + $0x1c] sm:$0xf]
    %645 = vrot.lane.b32.xlu0 %v634, 64
    %v646 = vpop.permute.xlu0 %645
    %v655 = vunpack.c.l.b16 %v636
    %v656 = vunpack.c.l.b16 %v637
    %v657 = vunpack.c.l.b16 %v638
    %v658 = vunpack.c.l.b16 %v639
    %v659 = vunpack.c.l.b16 %v640
    %v660 = vunpack.c.l.b16 %v641
    %v661 = vunpack.c.l.b16 %v642
    %v662 = vunpack.c.l.b16 %v643
    %v663 = vpack.c.b16 %v656, %v655
    %v664 = vpack.c.b16 %v658, %v657
    %v665 = vpack.c.b16 %v660, %v659
    %v666 = vpack.c.b16 %v662, %v661
    %v672 = vsel %vm516, %v646, 0
    %674 = vmatprep.subr.bf16.mxu0 0
    %675 = vmatpush1.bf16.msra.mxu0 %v663
    %676 = vmatprep.subr.bf16.mxu0 0
    %677 = vmatpush1.bf16.msra.mxu0 %v664
    %678 = vmatprep.subr.bf16.mxu0 0
    %679 = vmatpush1.bf16.msra.mxu0 %v665
    %680 = vmatprep.subr.bf16.mxu0 0
    %681 = vmatpush1.bf16.msra.mxu0 %v666
    %682 = vmatprep.subr.bf16.mxu0 0
    %683 = vmatpush1.bf16.msra.mxu0 0
    %684 = vmatprep.subr.bf16.mxu0 0
    %685 = vmatpush1.bf16.msra.mxu0 0
    %686 = vmatprep.subr.bf16.mxu0 0
    %687 = vmatpush1.bf16.msra.mxu0 0
    %688 = vmatprep.subr.bf16.mxu0 0
    %689 = vmatpush1.bf16.msra.mxu0 0
    %690 = vmatprep.subr.bf16.mxu0 0
    %691 = vmatpush1.bf16.msra.mxu0 0
    %692 = vmatprep.subr.bf16.mxu0 0
    %693 = vmatpush1.bf16.msra.mxu0 0
    %694 = vmatprep.subr.bf16.mxu0 0
    %695 = vmatpush1.bf16.msra.mxu0 0
    %696 = vmatprep.subr.bf16.mxu0 0
    %697 = vmatpush1.bf16.msra.mxu0 0
    %698 = vmatprep.subr.bf16.mxu0 0
    %699 = vmatpush1.bf16.msra.mxu0 0
    %700 = vmatprep.subr.bf16.mxu0 0
    %701 = vmatpush1.bf16.msra.mxu0 0
    %702 = vmatprep.subr.bf16.mxu0 0
    %703 = vmatpush1.bf16.msra.mxu0 0
    %704 = vmatprep.subr.bf16.mxu0 0
    %705 = vmatpush1.bf16.msra.mxu0 0
    %706 = vmatprep.mubr.bf16.mxu0 0
    %707 = vmatmul.mubr.bf16.gmra.mrb[0].mxu0 %v672
    %v708 = vpop.f32.mrb[0].mxu0
    %v709 = vadd.f32 0.0, %v708
    %v710 = vpop.f32.mrb[0].mxu0
    %v711 = vpop.f32.mrb[0].mxu0
    %v712 = vadd.f32 0.0, %v711
    %v713 = vpop.f32.mrb[0].mxu0
    %714 = vdwg.mxu0
    %v716 = vsel %vm516, %v635, 0
    %v719 = vsel %vm516, %v663, 0
    %v722 = vsel %vm516, %v664, 0
    %v725 = vsel %vm516, %v665, 0
    %v728 = vsel %vm516, %v666, 0
    %730 = vmatprep.subr.bf16.mxu0 0
    %731 = vmatpush1.bf16.xpose.msra.mxu0 %v719
    %732 = vmatprep.subr.bf16.mxu0 0
    %733 = vmatpush1.bf16.xpose.msra.mxu0 %v722
    %734 = vmatprep.subr.bf16.mxu0 0
    %735 = vmatpush1.bf16.xpose.msra.mxu0 %v725
    %736 = vmatprep.subr.bf16.mxu0 0
    %737 = vmatpush1.bf16.xpose.msra.mxu0 %v728
    %738 = vmatprep.subr.bf16.mxu0 0
    %739 = vmatpush1.bf16.xpose.msra.mxu0 0
    %740 = vmatprep.subr.bf16.mxu0 0
    %741 = vmatpush1.bf16.xpose.msra.mxu0 0
    %742 = vmatprep.subr.bf16.mxu0 0
    %743 = vmatpush1.bf16.xpose.msra.mxu0 0
    %744 = vmatprep.subr.bf16.mxu0 0
    %745 = vmatpush1.bf16.xpose.msra.mxu0 0
    %746 = vmatprep.subr.bf16.mxu0 0
    %747 = vmatpush1.bf16.xpose.msra.mxu0 0
    %748 = vmatprep.subr.bf16.mxu0 0
    %749 = vmatpush1.bf16.xpose.msra.mxu0 0
    %750 = vmatprep.subr.bf16.mxu0 0
    %751 = vmatpush1.bf16.xpose.msra.mxu0 0
    %752 = vmatprep.subr.bf16.mxu0 0
    %753 = vmatpush1.bf16.xpose.msra.mxu0 0
    %754 = vmatprep.subr.bf16.mxu0 0
    %755 = vmatpush1.bf16.xpose.msra.mxu0 0
    %756 = vmatprep.subr.bf16.mxu0 0
    %757 = vmatpush1.bf16.xpose.msra.mxu0 0
    %758 = vmatprep.subr.bf16.mxu0 0
    %759 = vmatpush1.bf16.xpose.msra.mxu0 0
    %760 = vmatprep.subr.bf16.mxu0 0
    %761 = vmatpush1.bf16.xpose.msra.mxu0 0
    %762 = vmatprep.mubr.bf16.mxu0 0
    %763 = vmatmul.mubr.bf16.gmra.mrb[0].mxu0 %v716
    %v764 = vpop.f32.mrb[0].mxu0
    %v765 = vadd.f32 0.0, %v764
    %v766 = vpop.f32.mrb[0].mxu0
    %v767 = vpop.f32.mrb[0].mxu0
    %v768 = vadd.f32 0.0, %v767
    %v769 = vpop.f32.mrb[0].mxu0
    %770 = vdwg.mxu0
    %v771 = vmul.f32 %v709, %v765
    %v772 = vmul.f32 %v712, %v768
    %773 = vmatprep.subr.bf16.mxu0 0
    %774 = vmatpush1.bf16.xpose.msra.mxu0 %v719
    %775 = vmatprep.subr.bf16.mxu0 0
    %776 = vmatpush1.bf16.xpose.msra.mxu0 %v722
    %777 = vmatprep.subr.bf16.mxu0 0
    %778 = vmatpush1.bf16.xpose.msra.mxu0 %v725
    %779 = vmatprep.subr.bf16.mxu0 0
    %780 = vmatpush1.bf16.xpose.msra.mxu0 %v728
    %781 = vmatprep.subr.bf16.mxu0 0
    %782 = vmatpush1.bf16.xpose.msra.mxu0 0
    %783 = vmatprep.subr.bf16.mxu0 0
    %784 = vmatpush1.bf16.xpose.msra.mxu0 0
    %785 = vmatprep.subr.bf16.mxu0 0
    %786 = vmatpush1.bf16.xpose.msra.mxu0 0
    %787 = vmatprep.subr.bf16.mxu0 0
    %788 = vmatpush1.bf16.xpose.msra.mxu0 0
    %789 = vmatprep.subr.bf16.mxu0 0
    %790 = vmatpush1.bf16.xpose.msra.mxu0 0
    %791 = vmatprep.subr.bf16.mxu0 0
    %792 = vmatpush1.bf16.xpose.msra.mxu0 0
    %793 = vmatprep.subr.bf16.mxu0 0
    %794 = vmatpush1.bf16.xpose.msra.mxu0 0
    %795 = vmatprep.subr.bf16.mxu0 0
    %796 = vmatpush1.bf16.xpose.msra.mxu0 0
    %797 = vmatprep.subr.bf16.mxu0 0
    %798 = vmatpush1.bf16.xpose.msra.mxu0 0
    %799 = vmatprep.subr.bf16.mxu0 0
    %800 = vmatpush1.bf16.xpose.msra.mxu0 0
    %801 = vmatprep.subr.bf16.mxu0 0
    %802 = vmatpush1.bf16.xpose.msra.mxu0 0
    %803 = vmatprep.subr.bf16.mxu0 0
    %804 = vmatpush1.bf16.xpose.msra.mxu0 0
    %805 = vmatprep.mubr.bf16.mxu0 0
    %806 = vmatmul.mubr.bf16.gmra.mrb[0].mxu0 %v672
    %v807 = vpop.f32.mrb[0].mxu0
    %v808 = vadd.f32 0.0, %v807
    %v809 = vpop.f32.mrb[0].mxu0
    %v810 = vpop.f32.mrb[0].mxu0
    %v811 = vadd.f32 0.0, %v810
    %v812 = vpop.f32.mrb[0].mxu0
    %813 = vdwg.mxu0
    %814 = vmatprep.subr.bf16.mxu0 0
    %815 = vmatpush1.bf16.msra.mxu0 %v663
    %816 = vmatprep.subr.bf16.mxu0 0
    %817 = vmatpush1.bf16.msra.mxu0 %v664
    %818 = vmatprep.subr.bf16.mxu0 0
    %819 = vmatpush1.bf16.msra.mxu0 %v665
    %820 = vmatprep.subr.bf16.mxu0 0
    %821 = vmatpush1.bf16.msra.mxu0 %v666
    %822 = vmatprep.subr.bf16.mxu0 0
    %823 = vmatpush1.bf16.msra.mxu0 0
    %824 = vmatprep.subr.bf16.mxu0 0
    %825 = vmatpush1.bf16.msra.mxu0 0
    %826 = vmatprep.subr.bf16.mxu0 0
    %827 = vmatpush1.bf16.msra.mxu0 0
    %828 = vmatprep.subr.bf16.mxu0 0
    %829 = vmatpush1.bf16.msra.mxu0 0
    %830 = vmatprep.subr.bf16.mxu0 0
    %831 = vmatpush1.bf16.msra.mxu0 0
    %832 = vmatprep.subr.bf16.mxu0 0
    %833 = vmatpush1.bf16.msra.mxu0 0
    %834 = vmatprep.subr.bf16.mxu0 0
    %835 = vmatpush1.bf16.msra.mxu0 0
    %836 = vmatprep.subr.bf16.mxu0 0
    %837 = vmatpush1.bf16.msra.mxu0 0
    %838 = vmatprep.subr.bf16.mxu0 0
    %839 = vmatpush1.bf16.msra.mxu0 0
    %840 = vmatprep.subr.bf16.mxu0 0
    %841 = vmatpush1.bf16.msra.mxu0 0
    %842 = vmatprep.subr.bf16.mxu0 0
    %843 = vmatpush1.bf16.msra.mxu0 0
    %844 = vmatprep.subr.bf16.mxu0 0
    %845 = vmatpush1.bf16.msra.mxu0 0
    %846 = vmatprep.mubr.bf16.mxu0 0
    %847 = vmatmul.mubr.bf16.gmra.mrb[0].mxu0 %v716
    %v848 = vpop.f32.mrb[0].mxu0
    %v849 = vadd.f32 0.0, %v848
    %v850 = vpop.f32.mrb[0].mxu0
    %v851 = vpop.f32.mrb[0].mxu0
    %v852 = vadd.f32 0.0, %v851
    %v853 = vpop.f32.mrb[0].mxu0
    %854 = vdwg.mxu0
    %v855 = vmul.f32 %v808, %v849
    %v856 = vmul.f32 %v811, %v852
    %v857 = vadd.f32 %v771, %v855
    %v858 = vadd.f32 %v772, %v856
    %v860 = vsel %vm516, %v857, 0
    %v863 = vsel %vm516, %v858, 0
    %865 = vmatprep.subr.mxu0 0.0
    %866 = vmatpush1.msra.mxu0 %v138
    %867 = vmatprep.subr.mxu0 0.0
    %868 = vmatpush1.msra.mxu0 %v139
    %869 = vmatprep.subr.mxu0 0.0
    %870 = vmatpush1.msra.mxu0 %v138
    %871 = vmatprep.subr.mxu0 0.0
    %872 = vmatpush1.msra.mxu0 %v139
    %873 = vmatprep.subr.mxu0 0.0
    %874 = vmatpush1.msra.mxu0 %v138
    %875 = vmatprep.subr.mxu0 0.0
    %876 = vmatpush1.msra.mxu0 %v139
    %877 = vmatprep.subr.mxu0 0.0
    %878 = vmatpush1.msra.mxu0 %v138
    %879 = vmatprep.subr.mxu0 0.0
    %880 = vmatpush1.msra.mxu0 %v139
    %881 = vmatprep.subr.mxu0 0.0
    %882 = vmatpush1.msra.mxu0 0.0
    %883 = vmatprep.subr.mxu0 0.0
    %884 = vmatpush1.msra.mxu0 0.0
    %885 = vmatprep.subr.mxu0 0.0
    %886 = vmatpush1.msra.mxu0 0.0
    %887 = vmatprep.subr.mxu0 0.0
    %888 = vmatpush1.msra.mxu0 0.0
    %889 = vmatprep.subr.mxu0 0.0
    %890 = vmatpush1.msra.mxu0 0.0
    %891 = vmatprep.subr.mxu0 0.0
    %892 = vmatpush1.msra.mxu0 0.0
    %893 = vmatprep.subr.mxu0 0.0
    %894 = vmatpush1.msra.mxu0 0.0
    %895 = vmatprep.subr.mxu0 0.0
    %896 = vmatpush1.msra.mxu0 0.0
    %897 = vmatprep.subr.mxu0 0.0
    %898 = vmatpush1.msra.mxu0 0.0
    %899 = vmatprep.subr.mxu0 0.0
    %900 = vmatpush1.msra.mxu0 0.0
    %901 = vmatprep.subr.mxu0 0.0
    %902 = vmatpush1.msra.mxu0 0.0
    %903 = vmatprep.subr.mxu0 0.0
    %904 = vmatpush1.msra.mxu0 0.0
    %905 = vmatprep.subr.mxu0 0.0
    %906 = vmatpush1.msra.mxu0 0.0
    %907 = vmatprep.subr.mxu0 0.0
    %908 = vmatpush1.msra.mxu0 0.0
    %909 = vmatprep.subr.mxu0 0.0
    %910 = vmatpush1.msra.mxu0 0.0
    %911 = vmatprep.subr.mxu0 0.0
    %912 = vmatpush1.msra.mxu0 0.0
    %913 = vmatprep.subr.mxu0 0.0
    %914 = vmatpush1.msra.mxu0 0.0
    %915 = vmatprep.subr.mxu0 0.0
    %916 = vmatpush1.msra.mxu0 0.0
    %917 = vmatprep.subr.mxu0 0.0
    %918 = vmatpush1.msra.mxu0 0.0
    %919 = vmatprep.subr.mxu0 0.0
    %920 = vmatpush1.msra.mxu0 0.0
    %921 = vmatprep.subr.mxu0 0.0
    %922 = vmatpush1.msra.mxu0 0.0
    %923 = vmatprep.subr.mxu0 0.0
    %924 = vmatpush1.msra.mxu0 0.0
    %925 = vmatprep.subr.mxu0 0.0
    %926 = vmatpush1.msra.mxu0 0.0
    %927 = vmatprep.subr.mxu0 0.0
    %928 = vmatpush1.msra.mxu0 0.0
    %929 = vmatprep.mubr.f32.mxu0 0.0
    %930 = vmatmul.mubr.f32.gmra.mrb[0].mxu0 %v860
    %v931 = vpop.f32.mrb[0].mxu0
    %v932 = vadd.f32 0.0, %v931
    %v933 = vpop.f32.mrb[0].mxu0
    %934 = vmatprep.mubr.f32.mxu0 0.0
    %935 = vmatmul.mubr.f32.gmra.mrb[0].mxu0 %v863
    %v936 = vpop.f32.mrb[0].mxu0
    %v937 = vadd.f32 0.0, %v936
    %v938 = vpop.f32.mrb[0].mxu0
    %939 = vdwg.mxu0
    %940 = vrot.lane.b32.xlu0 %v857, 64
    %v941 = vpop.permute.xlu0 %940
    %942 = vrot.lane.b32.xlu0 %v858, 64
    %v943 = vpop.permute.xlu0 %942
    %v946 = vmul.f32 %v469, %v941
    %v947 = vmul.f32 %v473, %v943
    %950 = vrot.lane.b32.xlu0 %v946, 64
    %v951 = vpop.permute.xlu0 %950
    %952 = vrot.lane.b32.xlu0 %v947, 64
    %v953 = vpop.permute.xlu0 %952
    %v956 = vadd.f32 %v467, %v951
    %v957 = vadd.f32 %v471, %v953
    %v958 = vsel %vm516, %v956, -inf
    %959 = vmax.xlane.f32.xlu0 %v958
    %v960 = vpop.xlane.xlu0 %959
    %v961 = vsel %vm516, %v957, -inf
    %962 = vmax.xlane.f32.xlu0 %v961
    %v963 = vpop.xlane.xlu0 %962
    %v964 = vsub.f32 %v956, %v960
    %v965 = vsub.f32 %v957, %v963
    %v966 = vmul.f32 %v964, 1.442695
    %v967 = vpow.pop %v966
    %v968 = vmul.f32 %v965, 1.442695
    %v969 = vpow.pop %v968
    %v970 = vpack.c.bf16 %v969, %v967
    %v972 = vsel %vm516, %v970, 0
    %974 = vmatprep.subr.bf16.mxu0 0
    %975 = vmatpush1.bf16.msra.mxu0 %v508
    %976 = vmatprep.subr.bf16.mxu0 0
    %977 = vmatpush1.bf16.msra.mxu0 %v509
    %978 = vmatprep.subr.bf16.mxu0 0
    %979 = vmatpush1.bf16.msra.mxu0 %v510
    %980 = vmatprep.subr.bf16.mxu0 0
    %981 = vmatpush1.bf16.msra.mxu0 %v511
    %982 = vmatprep.subr.bf16.mxu0 0
    %983 = vmatpush1.bf16.msra.mxu0 0
    %984 = vmatprep.subr.bf16.mxu0 0
    %985 = vmatpush1.bf16.msra.mxu0 0
    %986 = vmatprep.subr.bf16.mxu0 0
    %987 = vmatpush1.bf16.msra.mxu0 0
    %988 = vmatprep.subr.bf16.mxu0 0
    %989 = vmatpush1.bf16.msra.mxu0 0
    %990 = vmatprep.subr.bf16.mxu0 0
    %991 = vmatpush1.bf16.msra.mxu0 0
    %992 = vmatprep.subr.bf16.mxu0 0
    %993 = vmatpush1.bf16.msra.mxu0 0
    %994 = vmatprep.subr.bf16.mxu0 0
    %995 = vmatpush1.bf16.msra.mxu0 0
    %996 = vmatprep.subr.bf16.mxu0 0
    %997 = vmatpush1.bf16.msra.mxu0 0
    %998 = vmatprep.subr.bf16.mxu0 0
    %999 = vmatpush1.bf16.msra.mxu0 0
    %1000 = vmatprep.subr.bf16.mxu0 0
    %1001 = vmatpush1.bf16.msra.mxu0 0
    %1002 = vmatprep.subr.bf16.mxu0 0
    %1003 = vmatpush1.bf16.msra.mxu0 0
    %1004 = vmatprep.subr.bf16.mxu0 0
    %1005 = vmatpush1.bf16.msra.mxu0 0
    %1006 = vmatprep.mubr.bf16.mxu0 0
    %1007 = vmatmul.mubr.bf16.gmra.mrb[0].mxu0 %v972
    %v1008 = vpop.f32.mrb[0].mxu0
    %v1009 = vadd.f32 0.0, %v1008
    %v1010 = vpop.f32.mrb[0].mxu0
    %v1011 = vpop.f32.mrb[0].mxu0
    %v1012 = vadd.f32 0.0, %v1011
    %v1013 = vpop.f32.mrb[0].mxu0
    %1014 = vdwg.mxu0
    %v1015 = vrcp.pop %v1009
    %v1016 = vrcp.pop %v1012
    %v1017 = vmul.f32 %v967, %v1015
    %v1018 = vmul.f32 %v969, %v1016
    %v1019 = vld [vmem:[%s3] sm:$0xf]
    %v1020 = vld [vmem:[%s3 + $0x4] sm:$0xf]
    %v1021 = vld [vmem:[%s3 + $0x8] sm:$0xf]
    %v1022 = vld [vmem:[%s3 + $0xc] sm:$0xf]
    %v1023 = vld [vmem:[%s3 + $0x10] sm:$0xf]
    %v1024 = vld [vmem:[%s3 + $0x14] sm:$0xf]
    %v1025 = vld [vmem:[%s3 + $0x18] sm:$0xf]
    %v1026 = vld [vmem:[%s3 + $0x1c] sm:$0xf]
    %v1027 = vpack.c.bf16 %v283, %v280
    %v1036 = vunpack.c.l.b16 %v1019
    %v1037 = vunpack.c.l.b16 %v1020
    %v1038 = vunpack.c.l.b16 %v1021
    %v1039 = vunpack.c.l.b16 %v1022
    %v1040 = vunpack.c.l.b16 %v1023
    %v1041 = vunpack.c.l.b16 %v1024
    %v1042 = vunpack.c.l.b16 %v1025
    %v1043 = vunpack.c.l.b16 %v1026
    %v1044 = vpack.c.b16 %v1037, %v1036
    %v1045 = vpack.c.b16 %v1039, %v1038
    %v1046 = vpack.c.b16 %v1041, %v1040
    %v1047 = vpack.c.b16 %v1043, %v1042
    %v1052 = vmul.bf16 %v1027, %v1044
    %v1053 = vmul.bf16 %v1027, %v1045
    %v1054 = vmul.bf16 %v1027, %v1046
    %v1055 = vmul.bf16 %v1027, %v1047
    %v1056 = vpack.c.bf16 %v1018, %v1017
    %v1058 = vsel %vm516, %v1056, 0
    %1060 = vmatprep.subr.bf16.mxu0 0
    %1061 = vmatpush1.bf16.msra.mxu0 %v1052
    %1062 = vmatprep.subr.bf16.mxu0 0
    %1063 = vmatpush1.bf16.msra.mxu0 %v1053
    %1064 = vmatprep.subr.bf16.mxu0 0
    %1065 = vmatpush1.bf16.msra.mxu0 %v1054
    %1066 = vmatprep.subr.bf16.mxu0 0
    %1067 = vmatpush1.bf16.msra.mxu0 %v1055
    %1068 = vmatprep.subr.bf16.mxu0 0
    %1069 = vmatpush1.bf16.msra.mxu0 0
    %1070 = vmatprep.subr.bf16.mxu0 0
    %1071 = vmatpush1.bf16.msra.mxu0 0
    %1072 = vmatprep.subr.bf16.mxu0 0
    %1073 = vmatpush1.bf16.msra.mxu0 0
    %1074 = vmatprep.subr.bf16.mxu0 0
    %1075 = vmatpush1.bf16.msra.mxu0 0
    %1076 = vmatprep.subr.bf16.mxu0 0
    %1077 = vmatpush1.bf16.msra.mxu0 0
    %1078 = vmatprep.subr.bf16.mxu0 0
    %1079 = vmatpush1.bf16.msra.mxu0 0
    %1080 = vmatprep.subr.bf16.mxu0 0
    %1081 = vmatpush1.bf16.msra.mxu0 0
    %1082 = vmatprep.subr.bf16.mxu0 0
    %1083 = vmatpush1.bf16.msra.mxu0 0
    %1084 = vmatprep.subr.bf16.mxu0 0
    %1085 = vmatpush1.bf16.msra.mxu0 0
    %1086 = vmatprep.subr.bf16.mxu0 0
    %1087 = vmatpush1.bf16.msra.mxu0 0
    %1088 = vmatprep.subr.bf16.mxu0 0
    %1089 = vmatpush1.bf16.msra.mxu0 0
    %1090 = vmatprep.subr.bf16.mxu0 0
    %1091 = vmatpush1.bf16.msra.mxu0 0
    %1092 = vmatprep.mubr.bf16.mxu0 0
    %1093 = vmatmul.mubr.bf16.gmra.mrb[0].mxu0 %v1058
    %v1094 = vpop.f32.mrb[0].mxu0
    %v1095 = vadd.f32 0.0, %v1094
    %v1096 = vpop.f32.mrb[0].mxu0
    %v1097 = vpop.f32.mrb[0].mxu0
    %v1098 = vadd.f32 0.0, %v1097
    %v1099 = vpop.f32.mrb[0].mxu0
    %1100 = vdwg.mxu0
    %v1101 = vld [vmem:[#allocation12] sm:$0xff]
    %v1102 = vld [vmem:[#allocation7] sm:$0xf]
    %v1103 = vld [vmem:[#allocation7 + $0x4] sm:$0xf]
    %v1104 = vld [vmem:[#allocation7 + $0x8] sm:$0xf]
    %v1105 = vld [vmem:[#allocation7 + $0xc] sm:$0xf]
    %v1106 = vpack.c.bf16 %v1098, %v1095
    %v1111 = vunpack.c.l.b16 %v1102
    %v1112 = vunpack.c.l.b16 %v1103
    %v1113 = vunpack.c.l.b16 %v1104
    %v1114 = vunpack.c.l.b16 %v1105
    %v1115 = vpack.c.b16 %v1112, %v1111
    %v1116 = vpack.c.b16 %v1114, %v1113
    %v1120 = vsel %vm198, %v1106, 0
    %1122 = vmatprep.subr.bf16.mxu0 0
    %1123 = vmatpush1.bf16.msra.mxu0 %v1115
    %1124 = vmatprep.subr.bf16.mxu0 0
    %1125 = vmatpush1.bf16.msra.mxu0 %v1116
    %1126 = vmatprep.subr.bf16.mxu0 0
    %1127 = vmatpush1.bf16.msra.mxu0 0
    %1128 = vmatprep.subr.bf16.mxu0 0
    %1129 = vmatpush1.bf16.msra.mxu0 0
    %1130 = vmatprep.subr.bf16.mxu0 0
    %1131 = vmatpush1.bf16.msra.mxu0 0
    %1132 = vmatprep.subr.bf16.mxu0 0
    %1133 = vmatpush1.bf16.msra.mxu0 0
    %1134 = vmatprep.subr.bf16.mxu0 0
    %1135 = vmatpush1.bf16.msra.mxu0 0
    %1136 = vmatprep.subr.bf16.mxu0 0
    %1137 = vmatpush1.bf16.msra.mxu0 0
    %1138 = vmatprep.subr.bf16.mxu0 0
    %1139 = vmatpush1.bf16.msra.mxu0 0
    %1140 = vmatprep.subr.bf16.mxu0 0
    %1141 = vmatpush1.bf16.msra.mxu0 0
    %1142 = vmatprep.subr.bf16.mxu0 0
    %1143 = vmatpush1.bf16.msra.mxu0 0
    %1144 = vmatprep.subr.bf16.mxu0 0
    %1145 = vmatpush1.bf16.msra.mxu0 0
    %1146 = vmatprep.subr.bf16.mxu0 0
    %1147 = vmatpush1.bf16.msra.mxu0 0
    %1148 = vmatprep.subr.bf16.mxu0 0
    %1149 = vmatpush1.bf16.msra.mxu0 0
    %1150 = vmatprep.subr.bf16.mxu0 0
    %1151 = vmatpush1.bf16.msra.mxu0 0
    %1152 = vmatprep.subr.bf16.mxu0 0
    %1153 = vmatpush1.bf16.msra.mxu0 0
    %1154 = vmatprep.mubr.bf16.mxu0 0
    %1155 = vmatmul.mubr.bf16.gmra.mrb[0].mxu0 %v1120
    %v1156 = vpop.f32.mrb[0].mxu0
    %v1157 = vadd.f32 0.0, %v1156
    %v1158 = vpop.f32.mrb[0].mxu0
    %v1159 = vpop.f32.mrb[0].mxu0
    %v1160 = vadd.f32 0.0, %v1159
    %v1161 = vpop.f32.mrb[0].mxu0
    %1162 = vdwg.mxu0
    %v1163 = vadd.f32 %v138, %v1157
    %v1164 = vadd.f32 %v139, %v1160
    %v1165 = vlaneseq
    %v1166 = vshrl.u32 %v1165, 7
    %v1167 = vsub.s32 0, %v1166
    %v1168 = vrot.slane %v1101, %v1167
    %v1169 = vadd.f32 %v1163, %v1168
    %v1170 = vadd.f32 %v1164, %v1168
    %v1171 = vsel %vm198, %v1169, 0.0
    %1172 = vadd.xlane.f32.xlu0 %v1171
    %v1173 = vpop.xlane.xlu0 %1172
    %v1174 = vsel %vm198, %v1170, 0.0
    %1175 = vadd.xlane.f32.xlu0 %v1174
    %v1176 = vpop.xlane.xlu0 %1175
    %v1177 = vrcp.pop 32.0
    %v1178 = vmul.f32 %v1173, %v1177
    %v1179 = vmul.f32 %v1176, %v1177
    %v1180 = vsub.f32 %v1169, %v1178
    %v1181 = vsub.f32 %v1170, %v1179
    %v1182 = vmul.f32 %v1180, %v1180
    %v1183 = vmul.f32 %v1181, %v1181
    %v1184 = vsel %vm198, %v1182, 0.0
    %1185 = vadd.xlane.f32.xlu0 %v1184
    %v1186 = vpop.xlane.xlu0 %1185
    %v1187 = vsel %vm198, %v1183, 0.0
    %1188 = vadd.xlane.f32.xlu0 %v1187
    %v1189 = vpop.xlane.xlu0 %1188
    %v1190 = vmul.f32 %v1186, %v1177
    %v1191 = vmul.f32 %v1189, %v1177
    %v1192 = vadd.f32 %v1190, 1e-05
    %v1193 = vadd.f32 %v1191, 1e-05
    %v1194 = vrsqrt.pop %v1192
    %v1195 = vrsqrt.pop %v1193
    %v1196 = vmul.f32 %v1180, %v1194
    %v1197 = vmul.f32 %v1181, %v1195
    %v1198 = vlaneseq
    %v1199 = vshrl.u32 %v1198, 7
    %v1200 = vsub.s32 1, %v1199
    %v1201 = vrot.slane %v1101, %v1200
    %v1202 = vmul.f32 %v1196, %v1201
    %v1203 = vmul.f32 %v1197, %v1201
    %v1204 = vlaneseq
    %v1205 = vshrl.u32 %v1204, 7
    %v1206 = vsub.s32 2, %v1205
    %v1207 = vrot.slane %v1101, %v1206
    %v1208 = vadd.f32 %v1202, %v1207
    %v1209 = vadd.f32 %v1203, %v1207
    %v1210 = vld [vmem:[#allocation9] sm:$0xf]
    %v1211 = vld [vmem:[#allocation9 + $0x4] sm:$0xf]
    %v1212 = vld [vmem:[#allocation9 + $0x8] sm:$0xf]
    %v1213 = vld [vmem:[#allocation9 + $0xc] sm:$0xf]
    %v1214 = vpack.c.bf16 %v1209, %v1208
    %v1215 = vld [vmem:[#allocation10] sm:$0x1]
    %v1217 = vlaneseq
    %v1218 = vshrl.u32 %v1217, 7
    %v1219 = vsub.s32 0, %v1218
    %v1220 = vrot.slane %v1215, %v1219
    %v1226 = vunpack.c.l.b16 %v1210
    %v1227 = vunpack.c.l.b16 %v1211
    %v1228 = vunpack.c.l.b16 %v1212
    %v1229 = vunpack.c.l.b16 %v1213
    %v1230 = vpack.c.b16 %v1227, %v1226
    %v1231 = vpack.c.b16 %v1229, %v1228
    %v1235 = vsel %vm198, %v1214, 0
    %1237 = vmatprep.subr.bf16.mxu0 0
    %1238 = vmatpush1.bf16.msra.mxu0 %v1230
    %1239 = vmatprep.subr.bf16.mxu0 0
    %1240 = vmatpush1.bf16.msra.mxu0 %v1231
    %1241 = vmatprep.subr.bf16.mxu0 0
    %1242 = vmatpush1.bf16.msra.mxu0 0
    %1243 = vmatprep.subr.bf16.mxu0 0
    %1244 = vmatpush1.bf16.msra.mxu0 0
    %1245 = vmatprep.subr.bf16.mxu0 0
    %1246 = vmatpush1.bf16.msra.mxu0 0
    %1247 = vmatprep.subr.bf16.mxu0 0
    %1248 = vmatpush1.bf16.msra.mxu0 0
    %1249 = vmatprep.subr.bf16.mxu0 0
    %1250 = vmatpush1.bf16.msra.mxu0 0
    %1251 = vmatprep.subr.bf16.mxu0 0
    %1252 = vmatpush1.bf16.msra.mxu0 0
    %1253 = vmatprep.subr.bf16.mxu0 0
    %1254 = vmatpush1.bf16.msra.mxu0 0
    %1255 = vmatprep.subr.bf16.mxu0 0
    %1256 = vmatpush1.bf16.msra.mxu0 0
    %1257 = vmatprep.subr.bf16.mxu0 0
    %1258 = vmatpush1.bf16.msra.mxu0 0
    %1259 = vmatprep.subr.bf16.mxu0 0
    %1260 = vmatpush1.bf16.msra.mxu0 0
    %1261 = vmatprep.subr.bf16.mxu0 0
    %1262 = vmatpush1.bf16.msra.mxu0 0
    %1263 = vmatprep.subr.bf16.mxu0 0
    %1264 = vmatpush1.bf16.msra.mxu0 0
    %1265 = vmatprep.subr.bf16.mxu0 0
    %1266 = vmatpush1.bf16.msra.mxu0 0
    %1267 = vmatprep.subr.bf16.mxu0 0
    %1268 = vmatpush1.bf16.msra.mxu0 0
    %1269 = vmatprep.mubr.bf16.mxu0 0
    %1270 = vmatmul.mubr.bf16.gmra.mrb[0].mxu0 %v1235
    %v1271 = vpop.f32.mrb[0].mxu0
    %v1272 = vadd.f32 %v1220, %v1271
    %v1273 = vpop.f32.mrb[0].mxu0
    %v1274 = vpop.f32.mrb[0].mxu0
    %v1275 = vadd.f32 %v1220, %v1274
    %v1276 = vpop.f32.mrb[0].mxu0
    %1277 = vdwg.mxu0
    %v1278 = vmax.f32 %v1272, 0.0
    %v1279 = vmax.f32 %v1275, 0.0
    %v1280 = vld [vmem:[%s9] sm:$0xf]
    %v1281 = vld [vmem:[%s9 + $0x4] sm:$0xf]
    %v1282 = vld [vmem:[%s9 + $0x8] sm:$0xf]
    %v1283 = vld [vmem:[%s9 + $0xc] sm:$0xf]
    %v1284 = vld [vmem:[%s9 + $0x10] sm:$0xf]
    %v1285 = vld [vmem:[%s9 + $0x14] sm:$0xf]
    %v1286 = vld [vmem:[%s9 + $0x18] sm:$0xf]
    %v1287 = vld [vmem:[%s9 + $0x1c] sm:$0xf]
    %v1288 = vpack.c.bf16 %v1279, %v1278
    %v1289 = vlaneseq
    %v1290 = vshrl.u32 %v1289, 7
    %v1291 = vsub.s32 3, %v1290
    %v1292 = vrot.slane %v1101, %v1291
    %v1301 = vunpack.c.l.b16 %v1280
    %v1302 = vunpack.c.l.b16 %v1281
    %v1303 = vunpack.c.l.b16 %v1282
    %v1304 = vunpack.c.l.b16 %v1283
    %v1305 = vunpack.c.l.b16 %v1284
    %v1306 = vunpack.c.l.b16 %v1285
    %v1307 = vunpack.c.l.b16 %v1286
    %v1308 = vunpack.c.l.b16 %v1287
    %v1309 = vpack.c.b16 %v1302, %v1301
    %v1310 = vpack.c.b16 %v1304, %v1303
    %v1311 = vpack.c.b16 %v1306, %v1305
    %v1312 = vpack.c.b16 %v1308, %v1307
    %v1318 = vsel %vm516, %v1288, 0
    %1320 = vmatprep.subr.bf16.mxu0 0
    %1321 = vmatpush1.bf16.msra.mxu0 %v1309
    %1322 = vmatprep.subr.bf16.mxu0 0
    %1323 = vmatpush1.bf16.msra.mxu0 %v1310
    %1324 = vmatprep.subr.bf16.mxu0 0
    %1325 = vmatpush1.bf16.msra.mxu0 %v1311
    %1326 = vmatprep.subr.bf16.mxu0 0
    %1327 = vmatpush1.bf16.msra.mxu0 %v1312
    %1328 = vmatprep.subr.bf16.mxu0 0
    %1329 = vmatpush1.bf16.msra.mxu0 0
    %1330 = vmatprep.subr.bf16.mxu0 0
    %1331 = vmatpush1.bf16.msra.mxu0 0
    %1332 = vmatprep.subr.bf16.mxu0 0
    %1333 = vmatpush1.bf16.msra.mxu0 0
    %1334 = vmatprep.subr.bf16.mxu0 0
    %1335 = vmatpush1.bf16.msra.mxu0 0
    %1336 = vmatprep.subr.bf16.mxu0 0
    %1337 = vmatpush1.bf16.msra.mxu0 0
    %1338 = vmatprep.subr.bf16.mxu0 0
    %1339 = vmatpush1.bf16.msra.mxu0 0
    %1340 = vmatprep.subr.bf16.mxu0 0
    %1341 = vmatpush1.bf16.msra.mxu0 0
    %1342 = vmatprep.subr.bf16.mxu0 0
    %1343 = vmatpush1.bf16.msra.mxu0 0
    %1344 = vmatprep.subr.bf16.mxu0 0
    %1345 = vmatpush1.bf16.msra.mxu0 0
    %1346 = vmatprep.subr.bf16.mxu0 0
    %1347 = vmatpush1.bf16.msra.mxu0 0
    %1348 = vmatprep.subr.bf16.mxu0 0
    %1349 = vmatpush1.bf16.msra.mxu0 0
    %1350 = vmatprep.subr.bf16.mxu0 0
    %1351 = vmatpush1.bf16.msra.mxu0 0
    %1352 = vmatprep.mubr.bf16.mxu0 0
    %1353 = vmatmul.mubr.bf16.gmra.mrb[0].mxu0 %v1318
    %v1354 = vpop.f32.mrb[0].mxu0
    %v1355 = vadd.f32 %v1292, %v1354
    %v1356 = vpop.f32.mrb[0].mxu0
    %v1357 = vpop.f32.mrb[0].mxu0
    %v1358 = vadd.f32 %v1292, %v1357
    %v1359 = vpop.f32.mrb[0].mxu0
    %1360 = vdwg.mxu0
    %v1361 = vadd.f32 %v1208, %v1355
    %v1362 = vadd.f32 %v1209, %v1358
    %v1363 = vsel %vm198, %v1361, 0.0
    %1364 = vadd.xlane.f32.xlu0 %v1363
    %v1365 = vpop.xlane.xlu0 %1364
    %v1366 = vsel %vm198, %v1362, 0.0
    %1367 = vadd.xlane.f32.xlu0 %v1366
    %v1368 = vpop.xlane.xlu0 %1367
    %v1369 = vmul.f32 %v1365, %v1177
    %v1370 = vmul.f32 %v1368, %v1177
    %v1371 = vsub.f32 %v1361, %v1369
    %v1372 = vsub.f32 %v1362, %v1370
    %v1373 = vmul.f32 %v1371, %v1371
    %v1374 = vmul.f32 %v1372, %v1372
    %v1375 = vsel %vm198, %v1373, 0.0
    %1376 = vadd.xlane.f32.xlu0 %v1375
    %v1377 = vpop.xlane.xlu0 %1376
    %v1378 = vsel %vm198, %v1374, 0.0
    %1379 = vadd.xlane.f32.xlu0 %v1378
    %v1380 = vpop.xlane.xlu0 %1379
    %v1381 = vmul.f32 %v1377, %v1177
    %v1382 = vmul.f32 %v1380, %v1177
    %v1383 = vadd.f32 %v1381, 1e-05
    %v1384 = vadd.f32 %v1382, 1e-05
    %v1385 = vrsqrt.pop %v1383
    %v1386 = vrsqrt.pop %v1384
    %v1387 = vmul.f32 %v1371, %v1385
    %v1388 = vmul.f32 %v1372, %v1386
    %v1389 = vlaneseq
    %v1390 = vshrl.u32 %v1389, 7
    %v1391 = vsub.s32 4, %v1390
    %v1392 = vrot.slane %v1101, %v1391
    %v1393 = vmul.f32 %v1387, %v1392
    %v1394 = vmul.f32 %v1388, %v1392
    %v1395 = vlaneseq
    %v1396 = vshrl.u32 %v1395, 7
    %v1397 = vsub.s32 5, %v1396
    %v1398 = vrot.slane %v1101, %v1397
    %v1399 = vadd.f32 %v1393, %v1398
    %v1400 = vadd.f32 %v1394, %v1398
    %1403 = vrot.lane.b32.xlu0 %v932, 32
    %v1404 = vpop.permute.xlu0 %1403
    %1405 = vrot.lane.b32.xlu0 %v937, 32
    %v1406 = vpop.permute.xlu0 %1405
    %v1409 = vsel %vm198, %v1399, %v1404
    %v1410 = vsel %vm198, %v1400, %v1406
    %1411 = vst.msk [vmem:[%s11] sm:$0xff] %vm516, %v1409
    %1412 = vst.msk [vmem:[%s11 + $0x8] sm:$0xff] %vm516, %v1410
    // Predicated region
    $region74: #{run.1} parent=1 // pred_check
      _
    $region75: #{run.1} parent=1 // pred_check_branch
      %1414 = sbr.rel (0) target = $region77
    $region76: #{run.1} parent=1 // pred_region
      _
    $region77: #{run.1} parent=1 // pred_fallthru
      _
    // Predicated region
    $region78: #{run.1} parent=1 // pred_check
      _
    $region79: #{run.1} parent=1 // pred_check_branch
      %1416 = sbr.rel (0) target = $region81
    $region80: #{run.1} parent=1 // pred_region
      _
    $region81: #{run.1} parent=1 // pred_fallthru
      _
    %1417 = vsyncpa [#allocation3], 1
    %1418 = vsyncpa [#allocation5], 1
    %1419 = vsyncpa [#allocation8], 1
    %1420 = vsyncpa [#allocation11], 1

</llo_original>
